<compile_context>
chip_gen: v7x
topology: tpu7x:2x2x1
jax: 0.10.0
libtpu: 0.0.40
codegen_flags: <defaults>
</compile_context>

<pallas_src>
import jax
import jax.numpy as jnp
from jax import lax
from jax.experimental import pallas as pl
from jax.experimental.pallas import tpu as pltpu

HIDDEN = 32        # fixed by the module: Conv2d(1, 32, kernel_size=1)
LN_EPS = 1e-5      # torch.nn.LayerNorm default eps


def st_attention_fusion_kernel(x_ref, w1_ref, b1_ref, w2_ref, gamma_ref, beta_ref,
                               o_ref, y_scr):
    """One grid step computes the (T, F, L) output slab for B_TILE batches.

    x_ref     : (T, L)      VMEM  L = B_TILE*Np; hour-major, batch*nodes on lanes
    w1_ref    : (C, 1)      VMEM  conv1 weight as a column (C = 32 = sublane axis)
    b1_ref    : (C, 1)      VMEM  conv1 bias as a column
    w2_ref    : (F, C)      VMEM  conv2 weight (MXU lhs layout)
    gamma_ref : (T,)        SMEM  LayerNorm weight (per-hour scalars)
    beta_ref  : (T,)        SMEM  LayerNorm bias   (per-hour scalars)
    o_ref     : (T, F, L)   VMEM  output slab
    y_scr     : (T, F, CH)  VMEM  raw conv2 output for one lane chunk
    """
    T, L = x_ref.shape
    F, C = w2_ref.shape
    CH = y_scr.shape[-1]
    n_chunks = L // CH
    inv_t = 1.0 / T

    # Hoisted once per grid step (constant index_map -> single DMA per launch).
    w1c = w1_ref[...]                     # (C, 1)
    b1c = b1_ref[...]                     # (C, 1)
    w2 = w2_ref[...]                      # (F, C)

    for j in range(n_chunks):             # static unroll: lane chunks (<=1024 wide)
        lo = j * CH

        # ---- pass A: conv1 -> ReLU -> conv2 per hour, accumulate sum over T ----
        s1 = jnp.zeros((F, CH), jnp.float32)
        for t in range(T):                # static unroll: T = num_of_hour (small)
            x_t = x_ref[pl.ds(t, 1), pl.ds(lo, CH)]              # (1, CH) lane-dense
            h_t = jnp.maximum(x_t * w1c + b1c, 0.0)              # (C, CH)  VPU
            y_t = jnp.dot(w2, h_t,
                          preferred_element_type=jnp.float32)    # (F, CH)  MXU
            y_scr[t] = y_t
            s1 = s1 + y_t
        mean = s1 * inv_t                                         # (F, CH)

        # ---- pass B: biased variance over T (two-pass, matches torch numerics) --
        s2 = jnp.zeros((F, CH), jnp.float32)
        for t in range(T):
            d = y_scr[t] - mean
            s2 = s2 + d * d
        rstd = lax.rsqrt(s2 * inv_t + LN_EPS)                     # EUP

        # ---- pass C: normalize + per-hour affine, lane-dense stores -------------
        for t in range(T):
            o_ref[t, :, pl.ds(lo, CH)] = ((y_scr[t] - mean) * rstd * gamma_ref[t]
                                          + beta_ref[t])


def _largest_divisor_leq(n, cap):
    cap = max(1, min(n, cap))
    for d in range(cap, 0, -1):
        if n % d == 0:
            return d
    return 1


def _pick_lane_chunk(length, target=1024):
    """Largest multiple-of-128 divisor of `length` that is <= target (else length)."""
    best = length
    for c in range(128, min(length, target) + 1, 128):
        if length % c == 0:
            best = c
    return best


def st_attention_fusion(x, params, *, b_tile=None):
    """x: (B, 1, N, T) float32 -> (B, F_out, N, T) float32."""
    w1, b1, w2, b2, ln_w, ln_b = params
    # conv2's bias b2 is constant along the LayerNorm axis (T), so the LN mean
    # subtraction cancels it exactly -> it is not needed inside the kernel.
    del b2
    B, c_in, N, T = x.shape
    assert c_in == 1, "Conv2d(1, 32) requires a single input channel"
    C = w1.shape[0]
    assert C == HIDDEN
    F = w2.shape[0]

    # Lane-pad nodes so the last dim of every block is a multiple of 128
    # (avoids masked vst.msk partial stores for non-128-multiple node counts).
    n_pad = pl.cdiv(N, 128) * 128

    # Batch tile: target ~1 MiB output slab per grid step, keep grid length >= 2
    # so ("parallel",) can shard across the two v7x TensorCores.
    per_batch_out_bytes = T * F * n_pad * 4
    bt_cap = max(1, (1 << 20) // per_batch_out_bytes)
    if B >= 2:
        bt_cap = max(1, min(bt_cap, B // 2))
    if b_tile is None:
        b_tile = _largest_divisor_leq(B, bt_cap)
    assert B % b_tile == 0
    grid_b = B // b_tile
    L = b_tile * n_pad
    chunk = _pick_lane_chunk(L)            # inner lane chunk (bounds vreg pressure)

    # ---- input layout: (B,1,N,T) -> (G, T, B_TILE*Np), hour-major, lane-dense ----
    xs = x[:, 0]                                                   # (B, N, T)
    if n_pad != N:
        xs = jnp.pad(xs, ((0, 0), (0, n_pad - N), (0, 0)))
    xw = jnp.transpose(xs, (0, 2, 1))                              # (B, T, Np)
    xw = xw.reshape(grid_b, b_tile, T, n_pad).transpose(0, 2, 1, 3).reshape(
        grid_b, T, L)

    # Parameters in the layouts the kernel consumes (no per-step relayouts).
    w1c = w1.reshape(C, 1).astype(jnp.float32)     # sublane/contraction-axis column
    b1c = b1.reshape(C, 1).astype(jnp.float32)
    w2m = w2.reshape(F, C).astype(jnp.float32)     # MXU lhs
    gamma = ln_w.reshape(T).astype(jnp.float32)    # SMEM scalar vectors
    beta = ln_b.reshape(T).astype(jnp.float32)

    # Advisory cost hint for the XLA scheduler.
    flops = B * T * n_pad * (3 * C + 2 * C * F + 8 * F)
    transcendentals = B * F * n_pad                      # rsqrt per (b, f, n)
    bytes_accessed = 4 * (B * T * n_pad * (1 + F) + 2 * C + F * C + 2 * T)

    grid_spec = pltpu.PrefetchScalarGridSpec(
        num_scalar_prefetch=0,
        grid=(grid_b,),
        in_specs=[
            pl.BlockSpec((None, T, L), lambda g: (g, 0, 0)),        # x (batch tile)
            pl.BlockSpec((C, 1), lambda g: (0, 0)),                 # conv1 w column
            pl.BlockSpec((C, 1), lambda g: (0, 0)),                 # conv1 b column
            pl.BlockSpec((F, C), lambda g: (0, 0)),                 # conv2 w
            pl.BlockSpec(memory_space=pltpu.MemorySpace.SMEM),      # LN gamma (T,)
            pl.BlockSpec(memory_space=pltpu.MemorySpace.SMEM),      # LN beta  (T,)
        ],
        out_specs=pl.BlockSpec((None, T, F, L), lambda g: (g, 0, 0, 0)),
        scratch_shapes=[pltpu.VMEM((T, F, chunk), jnp.float32)],
    )

    out = pl.pallas_call(
        st_attention_fusion_kernel,
        out_shape=jax.ShapeDtypeStruct((grid_b, T, F, L), jnp.float32),
        grid_spec=grid_spec,
        compiler_params=pltpu.CompilerParams(
            dimension_semantics=("parallel",)),
        cost_estimate=pl.CostEstimate(flops=flops,
                                      transcendentals=transcendentals,
                                      bytes_accessed=bytes_accessed),
    )(xw, w1c, b1c, w2m, gamma, beta)

    # (G, T, F, B_TILE, Np) -> (B, F, Np, T), matching the module's output layout.
    # TODO(synk): fuse this transpose into the consumer (or keep a T-major layout)
    # if possible -- it is a full extra HBM read+write of the largest tensor.
    out = out.reshape(grid_b, T, F, b_tile, n_pad)
    out = jnp.transpose(out, (0, 3, 2, 4, 1)).reshape(B, F, n_pad, T)
    if n_pad != N:
        out = out[:, :, :N, :]
    return out


def reference(x, params):
    """Pure-JAX reference mirroring the PyTorch forward (includes the conv2 bias)."""
    w1, b1, w2, b2, ln_w, ln_b = params
    h = jnp.maximum(x * w1[None, :, None, None] + b1[None, :, None, None], 0.0)
    y = jnp.sum(h[:, None, :, :, :] * w2[None, :, :, None, None], axis=2)
    y = y + b2[None, :, None, None]
    mean = jnp.mean(y, axis=-1, keepdims=True)
    var = jnp.mean((y - mean) ** 2, axis=-1, keepdims=True)
    yn = (y - mean) / jnp.sqrt(var + LN_EPS)
    return yn * ln_w + ln_b


if __name__ == "__main__":
    # Small shapes consistent with the module: input channels must be 1
    # (Conv2d(1, 32)), nodes N=128, num_of_hour T=8, features_out=8, batch=4
    # (batch 4 exercises the B_TILE>1 batched-grid-step path with grid length 2).
    B, N, T = 4, 128, 8
    F_OUT = 8

    key = jax.random.PRNGKey(0)
    kx, k1, k2, k3, k4, k5, k6 = jax.random.split(key, 7)

    x = jax.random.normal(kx, (B, 1, N, T), dtype=jnp.float32)

    # Deterministic synthetic parameters (module __init__ only specifies shapes).
    w1 = jax.random.normal(k1, (HIDDEN,), dtype=jnp.float32) * 0.5               # Conv2d(1,32,1) w
    b1 = jax.random.normal(k2, (HIDDEN,), dtype=jnp.float32) * 0.1               # Conv2d(1,32,1) b
    w2 = jax.random.normal(k3, (F_OUT, HIDDEN), dtype=jnp.float32) / jnp.sqrt(HIDDEN)  # Conv2d(32,F,1) w
    b2 = jax.random.normal(k4, (F_OUT,), dtype=jnp.float32) * 0.1                # Conv2d(32,F,1) b
    ln_w = 1.0 + 0.1 * jax.random.normal(k5, (T,), dtype=jnp.float32)            # LayerNorm(T) w
    ln_b = 0.1 * jax.random.normal(k6, (T,), dtype=jnp.float32)                  # LayerNorm(T) b

    params = (w1, b1, w2, b2, ln_w, ln_b)

    out = jax.block_until_ready(st_attention_fusion(x, params))
    ref = jax.block_until_ready(reference(x, params))

    assert out.shape == (B, F_OUT, N, T)
    max_err = jnp.max(jnp.abs(out - ref))
    assert jnp.allclose(out, ref, atol=1e-3, rtol=1e-3), f"max abs err {max_err}"

    print("KERNEL_OK")
</pallas_src>

<mosaic_0001>
module attributes {stable_mosaic.version = 11 : i64} {
  func.func @st_attention_fusion_kernel(%arg0: i32, %arg1: memref<1x8x256xf32, #tpu.memory_space<vmem>>, %arg2: memref<32x1xf32, #tpu.memory_space<vmem>>, %arg3: memref<32x1xf32, #tpu.memory_space<vmem>>, %arg4: memref<8x32xf32, #tpu.memory_space<vmem>>, %arg5: memref<8xf32, #tpu.memory_space<smem>>, %arg6: memref<8xf32, #tpu.memory_space<smem>>, %arg7: memref<1x8x8x256xf32, #tpu.memory_space<vmem>>, %arg8: memref<8x8x256xf32, #tpu.memory_space<vmem>>) attributes {dimension_semantics = [#tpu.dimension_semantics<parallel>], iteration_bounds = array<i64: 2>, scalar_prefetch = 0 : i64, scratch_operands = 1 : i64, tpu.core_type = #tpu.core_type<tc>, window_params = [{transform_indices = @transform_0, window_bounds = array<i64: 1, 8, 256>}, {pipeline_mode = #tpu.pipeline_mode<synchronous>, transform_indices = @transform_1, window_bounds = array<i64: 32, 1>}, {pipeline_mode = #tpu.pipeline_mode<synchronous>, transform_indices = @transform_2, window_bounds = array<i64: 32, 1>}, {pipeline_mode = #tpu.pipeline_mode<synchronous>, transform_indices = @transform_3, window_bounds = array<i64: 8, 32>}, {transform_indices = @transform_4, window_bounds = array<i64: 8>}, {transform_indices = @transform_5, window_bounds = array<i64: 8>}, {transform_indices = @transform_6, window_bounds = array<i64: 1, 8, 8, 256>}]} {
    %c0 = arith.constant 0 : index
    %c0_0 = arith.constant 0 : index
    %0 = vector.load %arg2[%c0, %c0_0] : memref<32x1xf32, #tpu.memory_space<vmem>>, vector<32x1xf32>
    %c0_1 = arith.constant 0 : index
    %c0_2 = arith.constant 0 : index
    %1 = vector.load %arg3[%c0_1, %c0_2] : memref<32x1xf32, #tpu.memory_space<vmem>>, vector<32x1xf32>
    %c0_3 = arith.constant 0 : index
    %c0_4 = arith.constant 0 : index
    %2 = vector.load %arg4[%c0_3, %c0_4] : memref<8x32xf32, #tpu.memory_space<vmem>>, vector<8x32xf32>
    %cst = arith.constant 0.000000e+00 : f32
    %3 = vector.broadcast %cst : f32 to vector<8x256xf32>
    %c0_5 = arith.constant 0 : index
    %c0_6 = arith.constant 0 : index
    %c0_7 = arith.constant 0 : index
    %4 = vector.load %arg1[%c0_5, %c0_6, %c0_7] : memref<1x8x256xf32, #tpu.memory_space<vmem>>, vector<1x1x256xf32>
    %5 = vector.shape_cast %4 : vector<1x1x256xf32> to vector<1x256xf32>
    %6 = vector.broadcast %5 : vector<1x256xf32> to vector<32x256xf32>
    %7 = vector.broadcast %0 : vector<32x1xf32> to vector<32x256xf32>
    %8 = arith.mulf %6, %7 : vector<32x256xf32>
    %9 = vector.broadcast %1 : vector<32x1xf32> to vector<32x256xf32>
    %10 = arith.addf %8, %9 : vector<32x256xf32>
    %cst_8 = arith.constant 0.000000e+00 : f32
    %11 = vector.broadcast %cst_8 : f32 to vector<32x256xf32>
    %12 = arith.maximumf %10, %11 : vector<32x256xf32>
    %cst_9 = arith.constant dense<0.000000e+00> : vector<8x256xf32>
    %13 = tpu.matmul %2, %12, %cst_9 {dimension_numbers = #tpu.dot_dimension_numbers<[1], [0], [0], [1], [0, 0, 1, 1], [], []>} : vector<8x32xf32>, vector<32x256xf32>, vector<8x256xf32> -> vector<8x256xf32>
    %c0_10 = arith.constant 0 : index
    %c0_11 = arith.constant 0 : index
    %c0_12 = arith.constant 0 : index
    %14 = vector.load %arg8[%c0_10, %c0_11, %c0_12] : memref<8x8x256xf32, #tpu.memory_space<vmem>>, vector<1x8x256xf32>
    %15 = vector.shape_cast %14 : vector<1x8x256xf32> to vector<8x256xf32>
    %16 = vector.shape_cast %13 : vector<8x256xf32> to vector<1x8x256xf32>
    tpu.vector_store %arg8[%c0_10, %c0_11, %c0_12], %16 {strides = array<i32>} : memref<8x8x256xf32, #tpu.memory_space<vmem>>, vector<1x8x256xf32>,
    %17 = arith.addf %3, %13 : vector<8x256xf32>
    %c0_13 = arith.constant 0 : index
    %c1 = arith.constant 1 : index
    %c0_14 = arith.constant 0 : index
    %18 = vector.load %arg1[%c0_13, %c1, %c0_14] : memref<1x8x256xf32, #tpu.memory_space<vmem>>, vector<1x1x256xf32>
    %19 = vector.shape_cast %18 : vector<1x1x256xf32> to vector<1x256xf32>
    %20 = vector.broadcast %19 : vector<1x256xf32> to vector<32x256xf32>
    %21 = vector.broadcast %0 : vector<32x1xf32> to vector<32x256xf32>
    %22 = arith.mulf %20, %21 : vector<32x256xf32>
    %23 = vector.broadcast %1 : vector<32x1xf32> to vector<32x256xf32>
    %24 = arith.addf %22, %23 : vector<32x256xf32>
    %cst_15 = arith.constant 0.000000e+00 : f32
    %25 = vector.broadcast %cst_15 : f32 to vector<32x256xf32>
    %26 = arith.maximumf %24, %25 : vector<32x256xf32>
    %cst_16 = arith.constant dense<0.000000e+00> : vector<8x256xf32>
    %27 = tpu.matmul %2, %26, %cst_16 {dimension_numbers = #tpu.dot_dimension_numbers<[1], [0], [0], [1], [0, 0, 1, 1], [], []>} : vector<8x32xf32>, vector<32x256xf32>, vector<8x256xf32> -> vector<8x256xf32>
    %c1_17 = arith.constant 1 : index
    %c0_18 = arith.constant 0 : index
    %c0_19 = arith.constant 0 : index
    %28 = vector.load %arg8[%c1_17, %c0_18, %c0_19] : memref<8x8x256xf32, #tpu.memory_space<vmem>>, vector<1x8x256xf32>
    %29 = vector.shape_cast %28 : vector<1x8x256xf32> to vector<8x256xf32>
    %30 = vector.shape_cast %27 : vector<8x256xf32> to vector<1x8x256xf32>
    tpu.vector_store %arg8[%c1_17, %c0_18, %c0_19], %30 {strides = array<i32>} : memref<8x8x256xf32, #tpu.memory_space<vmem>>, vector<1x8x256xf32>,
    %31 = arith.addf %17, %27 : vector<8x256xf32>
    %c0_20 = arith.constant 0 : index
    %c2 = arith.constant 2 : index
    %c0_21 = arith.constant 0 : index
    %32 = vector.load %arg1[%c0_20, %c2, %c0_21] : memref<1x8x256xf32, #tpu.memory_space<vmem>>, vector<1x1x256xf32>
    %33 = vector.shape_cast %32 : vector<1x1x256xf32> to vector<1x256xf32>
    %34 = vector.broadcast %33 : vector<1x256xf32> to vector<32x256xf32>
    %35 = vector.broadcast %0 : vector<32x1xf32> to vector<32x256xf32>
    %36 = arith.mulf %34, %35 : vector<32x256xf32>
    %37 = vector.broadcast %1 : vector<32x1xf32> to vector<32x256xf32>
    %38 = arith.addf %36, %37 : vector<32x256xf32>
    %cst_22 = arith.constant 0.000000e+00 : f32
    %39 = vector.broadcast %cst_22 : f32 to vector<32x256xf32>
    %40 = arith.maximumf %38, %39 : vector<32x256xf32>
    %cst_23 = arith.constant dense<0.000000e+00> : vector<8x256xf32>
    %41 = tpu.matmul %2, %40, %cst_23 {dimension_numbers = #tpu.dot_dimension_numbers<[1], [0], [0], [1], [0, 0, 1, 1], [], []>} : vector<8x32xf32>, vector<32x256xf32>, vector<8x256xf32> -> vector<8x256xf32>
    %c2_24 = arith.constant 2 : index
    %c0_25 = arith.constant 0 : index
    %c0_26 = arith.constant 0 : index
    %42 = vector.load %arg8[%c2_24, %c0_25, %c0_26] : memref<8x8x256xf32, #tpu.memory_space<vmem>>, vector<1x8x256xf32>
    %43 = vector.shape_cast %42 : vector<1x8x256xf32> to vector<8x256xf32>
    %44 = vector.shape_cast %41 : vector<8x256xf32> to vector<1x8x256xf32>
    tpu.vector_store %arg8[%c2_24, %c0_25, %c0_26], %44 {strides = array<i32>} : memref<8x8x256xf32, #tpu.memory_space<vmem>>, vector<1x8x256xf32>,
    %45 = arith.addf %31, %41 : vector<8x256xf32>
    %c0_27 = arith.constant 0 : index
    %c3 = arith.constant 3 : index
    %c0_28 = arith.constant 0 : index
    %46 = vector.load %arg1[%c0_27, %c3, %c0_28] : memref<1x8x256xf32, #tpu.memory_space<vmem>>, vector<1x1x256xf32>
    %47 = vector.shape_cast %46 : vector<1x1x256xf32> to vector<1x256xf32>
    %48 = vector.broadcast %47 : vector<1x256xf32> to vector<32x256xf32>
    %49 = vector.broadcast %0 : vector<32x1xf32> to vector<32x256xf32>
    %50 = arith.mulf %48, %49 : vector<32x256xf32>
    %51 = vector.broadcast %1 : vector<32x1xf32> to vector<32x256xf32>
    %52 = arith.addf %50, %51 : vector<32x256xf32>
    %cst_29 = arith.constant 0.000000e+00 : f32
    %53 = vector.broadcast %cst_29 : f32 to vector<32x256xf32>
    %54 = arith.maximumf %52, %53 : vector<32x256xf32>
    %cst_30 = arith.constant dense<0.000000e+00> : vector<8x256xf32>
    %55 = tpu.matmul %2, %54, %cst_30 {dimension_numbers = #tpu.dot_dimension_numbers<[1], [0], [0], [1], [0, 0, 1, 1], [], []>} : vector<8x32xf32>, vector<32x256xf32>, vector<8x256xf32> -> vector<8x256xf32>
    %c3_31 = arith.constant 3 : index
    %c0_32 = arith.constant 0 : index
    %c0_33 = arith.constant 0 : index
    %56 = vector.load %arg8[%c3_31, %c0_32, %c0_33] : memref<8x8x256xf32, #tpu.memory_space<vmem>>, vector<1x8x256xf32>
    %57 = vector.shape_cast %56 : vector<1x8x256xf32> to vector<8x256xf32>
    %58 = vector.shape_cast %55 : vector<8x256xf32> to vector<1x8x256xf32>
    tpu.vector_store %arg8[%c3_31, %c0_32, %c0_33], %58 {strides = array<i32>} : memref<8x8x256xf32, #tpu.memory_space<vmem>>, vector<1x8x256xf32>,
    %59 = arith.addf %45, %55 : vector<8x256xf32>
    %c0_34 = arith.constant 0 : index
    %c4 = arith.constant 4 : index
    %c0_35 = arith.constant 0 : index
    %60 = vector.load %arg1[%c0_34, %c4, %c0_35] : memref<1x8x256xf32, #tpu.memory_space<vmem>>, vector<1x1x256xf32>
    %61 = vector.shape_cast %60 : vector<1x1x256xf32> to vector<1x256xf32>
    %62 = vector.broadcast %61 : vector<1x256xf32> to vector<32x256xf32>
    %63 = vector.broadcast %0 : vector<32x1xf32> to vector<32x256xf32>
    %64 = arith.mulf %62, %63 : vector<32x256xf32>
    %65 = vector.broadcast %1 : vector<32x1xf32> to vector<32x256xf32>
    %66 = arith.addf %64, %65 : vector<32x256xf32>
    %cst_36 = arith.constant 0.000000e+00 : f32
    %67 = vector.broadcast %cst_36 : f32 to vector<32x256xf32>
    %68 = arith.maximumf %66, %67 : vector<32x256xf32>
    %cst_37 = arith.constant dense<0.000000e+00> : vector<8x256xf32>
    %69 = tpu.matmul %2, %68, %cst_37 {dimension_numbers = #tpu.dot_dimension_numbers<[1], [0], [0], [1], [0, 0, 1, 1], [], []>} : vector<8x32xf32>, vector<32x256xf32>, vector<8x256xf32> -> vector<8x256xf32>
    %c4_38 = arith.constant 4 : index
    %c0_39 = arith.constant 0 : index
    %c0_40 = arith.constant 0 : index
    %70 = vector.load %arg8[%c4_38, %c0_39, %c0_40] : memref<8x8x256xf32, #tpu.memory_space<vmem>>, vector<1x8x256xf32>
    %71 = vector.shape_cast %70 : vector<1x8x256xf32> to vector<8x256xf32>
    %72 = vector.shape_cast %69 : vector<8x256xf32> to vector<1x8x256xf32>
    tpu.vector_store %arg8[%c4_38, %c0_39, %c0_40], %72 {strides = array<i32>} : memref<8x8x256xf32, #tpu.memory_space<vmem>>, vector<1x8x256xf32>,
    %73 = arith.addf %59, %69 : vector<8x256xf32>
    %c0_41 = arith.constant 0 : index
    %c5 = arith.constant 5 : index
    %c0_42 = arith.constant 0 : index
    %74 = vector.load %arg1[%c0_41, %c5, %c0_42] : memref<1x8x256xf32, #tpu.memory_space<vmem>>, vector<1x1x256xf32>
    %75 = vector.shape_cast %74 : vector<1x1x256xf32> to vector<1x256xf32>
    %76 = vector.broadcast %75 : vector<1x256xf32> to vector<32x256xf32>
    %77 = vector.broadcast %0 : vector<32x1xf32> to vector<32x256xf32>
    %78 = arith.mulf %76, %77 : vector<32x256xf32>
    %79 = vector.broadcast %1 : vector<32x1xf32> to vector<32x256xf32>
    %80 = arith.addf %78, %79 : vector<32x256xf32>
    %cst_43 = arith.constant 0.000000e+00 : f32
    %81 = vector.broadcast %cst_43 : f32 to vector<32x256xf32>
    %82 = arith.maximumf %80, %81 : vector<32x256xf32>
    %cst_44 = arith.constant dense<0.000000e+00> : vector<8x256xf32>
    %83 = tpu.matmul %2, %82, %cst_44 {dimension_numbers = #tpu.dot_dimension_numbers<[1], [0], [0], [1], [0, 0, 1, 1], [], []>} : vector<8x32xf32>, vector<32x256xf32>, vector<8x256xf32> -> vector<8x256xf32>
    %c5_45 = arith.constant 5 : index
    %c0_46 = arith.constant 0 : index
    %c0_47 = arith.constant 0 : index
    %84 = vector.load %arg8[%c5_45, %c0_46, %c0_47] : memref<8x8x256xf32, #tpu.memory_space<vmem>>, vector<1x8x256xf32>
    %85 = vector.shape_cast %84 : vector<1x8x256xf32> to vector<8x256xf32>
    %86 = vector.shape_cast %83 : vector<8x256xf32> to vector<1x8x256xf32>
    tpu.vector_store %arg8[%c5_45, %c0_46, %c0_47], %86 {strides = array<i32>} : memref<8x8x256xf32, #tpu.memory_space<vmem>>, vector<1x8x256xf32>,
    %87 = arith.addf %73, %83 : vector<8x256xf32>
    %c0_48 = arith.constant 0 : index
    %c6 = arith.constant 6 : index
    %c0_49 = arith.constant 0 : index
    %88 = vector.load %arg1[%c0_48, %c6, %c0_49] : memref<1x8x256xf32, #tpu.memory_space<vmem>>, vector<1x1x256xf32>
    %89 = vector.shape_cast %88 : vector<1x1x256xf32> to vector<1x256xf32>
    %90 = vector.broadcast %89 : vector<1x256xf32> to vector<32x256xf32>
    %91 = vector.broadcast %0 : vector<32x1xf32> to vector<32x256xf32>
    %92 = arith.mulf %90, %91 : vector<32x256xf32>
    %93 = vector.broadcast %1 : vector<32x1xf32> to vector<32x256xf32>
    %94 = arith.addf %92, %93 : vector<32x256xf32>
    %cst_50 = arith.constant 0.000000e+00 : f32
    %95 = vector.broadcast %cst_50 : f32 to vector<32x256xf32>
    %96 = arith.maximumf %94, %95 : vector<32x256xf32>
    %cst_51 = arith.constant dense<0.000000e+00> : vector<8x256xf32>
    %97 = tpu.matmul %2, %96, %cst_51 {dimension_numbers = #tpu.dot_dimension_numbers<[1], [0], [0], [1], [0, 0, 1, 1], [], []>} : vector<8x32xf32>, vector<32x256xf32>, vector<8x256xf32> -> vector<8x256xf32>
    %c6_52 = arith.constant 6 : index
    %c0_53 = arith.constant 0 : index
    %c0_54 = arith.constant 0 : index
    %98 = vector.load %arg8[%c6_52, %c0_53, %c0_54] : memref<8x8x256xf32, #tpu.memory_space<vmem>>, vector<1x8x256xf32>
    %99 = vector.shape_cast %98 : vector<1x8x256xf32> to vector<8x256xf32>
    %100 = vector.shape_cast %97 : vector<8x256xf32> to vector<1x8x256xf32>
    tpu.vector_store %arg8[%c6_52, %c0_53, %c0_54], %100 {strides = array<i32>} : memref<8x8x256xf32, #tpu.memory_space<vmem>>, vector<1x8x256xf32>,
    %101 = arith.addf %87, %97 : vector<8x256xf32>
    %c0_55 = arith.constant 0 : index
    %c7 = arith.constant 7 : index
    %c0_56 = arith.constant 0 : index
    %102 = vector.load %arg1[%c0_55, %c7, %c0_56] : memref<1x8x256xf32, #tpu.memory_space<vmem>>, vector<1x1x256xf32>
    %103 = vector.shape_cast %102 : vector<1x1x256xf32> to vector<1x256xf32>
    %104 = vector.broadcast %103 : vector<1x256xf32> to vector<32x256xf32>
    %105 = vector.broadcast %0 : vector<32x1xf32> to vector<32x256xf32>
    %106 = arith.mulf %104, %105 : vector<32x256xf32>
    %107 = vector.broadcast %1 : vector<32x1xf32> to vector<32x256xf32>
    %108 = arith.addf %106, %107 : vector<32x256xf32>
    %cst_57 = arith.constant 0.000000e+00 : f32
    %109 = vector.broadcast %cst_57 : f32 to vector<32x256xf32>
    %110 = arith.maximumf %108, %109 : vector<32x256xf32>
    %cst_58 = arith.constant dense<0.000000e+00> : vector<8x256xf32>
    %111 = tpu.matmul %2, %110, %cst_58 {dimension_numbers = #tpu.dot_dimension_numbers<[1], [0], [0], [1], [0, 0, 1, 1], [], []>} : vector<8x32xf32>, vector<32x256xf32>, vector<8x256xf32> -> vector<8x256xf32>
    %c7_59 = arith.constant 7 : index
    %c0_60 = arith.constant 0 : index
    %c0_61 = arith.constant 0 : index
    %112 = vector.load %arg8[%c7_59, %c0_60, %c0_61] : memref<8x8x256xf32, #tpu.memory_space<vmem>>, vector<1x8x256xf32>
    %113 = vector.shape_cast %112 : vector<1x8x256xf32> to vector<8x256xf32>
    %114 = vector.shape_cast %111 : vector<8x256xf32> to vector<1x8x256xf32>
    tpu.vector_store %arg8[%c7_59, %c0_60, %c0_61], %114 {strides = array<i32>} : memref<8x8x256xf32, #tpu.memory_space<vmem>>, vector<1x8x256xf32>,
    %115 = arith.addf %101, %111 : vector<8x256xf32>
    %cst_62 = arith.constant 1.250000e-01 : f32
    %116 = vector.broadcast %cst_62 : f32 to vector<8x256xf32>
    %117 = arith.mulf %115, %116 : vector<8x256xf32>
    %cst_63 = arith.constant 0.000000e+00 : f32
    %118 = vector.broadcast %cst_63 : f32 to vector<8x256xf32>
    %c0_64 = arith.constant 0 : index
    %c0_65 = arith.constant 0 : index
    %c0_66 = arith.constant 0 : index
    %119 = vector.load %arg8[%c0_64, %c0_65, %c0_66] : memref<8x8x256xf32, #tpu.memory_space<vmem>>, vector<1x8x256xf32>
    %120 = vector.shape_cast %119 : vector<1x8x256xf32> to vector<8x256xf32>
    %121 = arith.subf %120, %117 : vector<8x256xf32>
    %122 = arith.mulf %121, %121 : vector<8x256xf32>
    %123 = arith.addf %118, %122 : vector<8x256xf32>
    %c1_67 = arith.constant 1 : index
    %c0_68 = arith.constant 0 : index
    %c0_69 = arith.constant 0 : index
    %124 = vector.load %arg8[%c1_67, %c0_68, %c0_69] : memref<8x8x256xf32, #tpu.memory_space<vmem>>, vector<1x8x256xf32>
    %125 = vector.shape_cast %124 : vector<1x8x256xf32> to vector<8x256xf32>
    %126 = arith.subf %125, %117 : vector<8x256xf32>
    %127 = arith.mulf %126, %126 : vector<8x256xf32>
    %128 = arith.addf %123, %127 : vector<8x256xf32>
    %c2_70 = arith.constant 2 : index
    %c0_71 = arith.constant 0 : index
    %c0_72 = arith.constant 0 : index
    %129 = vector.load %arg8[%c2_70, %c0_71, %c0_72] : memref<8x8x256xf32, #tpu.memory_space<vmem>>, vector<1x8x256xf32>
    %130 = vector.shape_cast %129 : vector<1x8x256xf32> to vector<8x256xf32>
    %131 = arith.subf %130, %117 : vector<8x256xf32>
    %132 = arith.mulf %131, %131 : vector<8x256xf32>
    %133 = arith.addf %128, %132 : vector<8x256xf32>
    %c3_73 = arith.constant 3 : index
    %c0_74 = arith.constant 0 : index
    %c0_75 = arith.constant 0 : index
    %134 = vector.load %arg8[%c3_73, %c0_74, %c0_75] : memref<8x8x256xf32, #tpu.memory_space<vmem>>, vector<1x8x256xf32>
    %135 = vector.shape_cast %134 : vector<1x8x256xf32> to vector<8x256xf32>
    %136 = arith.subf %135, %117 : vector<8x256xf32>
    %137 = arith.mulf %136, %136 : vector<8x256xf32>
    %138 = arith.addf %133, %137 : vector<8x256xf32>
    %c4_76 = arith.constant 4 : index
    %c0_77 = arith.constant 0 : index
    %c0_78 = arith.constant 0 : index
    %139 = vector.load %arg8[%c4_76, %c0_77, %c0_78] : memref<8x8x256xf32, #tpu.memory_space<vmem>>, vector<1x8x256xf32>
    %140 = vector.shape_cast %139 : vector<1x8x256xf32> to vector<8x256xf32>
    %141 = arith.subf %140, %117 : vector<8x256xf32>
    %142 = arith.mulf %141, %141 : vector<8x256xf32>
    %143 = arith.addf %138, %142 : vector<8x256xf32>
    %c5_79 = arith.constant 5 : index
    %c0_80 = arith.constant 0 : index
    %c0_81 = arith.constant 0 : index
    %144 = vector.load %arg8[%c5_79, %c0_80, %c0_81] : memref<8x8x256xf32, #tpu.memory_space<vmem>>, vector<1x8x256xf32>
    %145 = vector.shape_cast %144 : vector<1x8x256xf32> to vector<8x256xf32>
    %146 = arith.subf %145, %117 : vector<8x256xf32>
    %147 = arith.mulf %146, %146 : vector<8x256xf32>
    %148 = arith.addf %143, %147 : vector<8x256xf32>
    %c6_82 = arith.constant 6 : index
    %c0_83 = arith.constant 0 : index
    %c0_84 = arith.constant 0 : index
    %149 = vector.load %arg8[%c6_82, %c0_83, %c0_84] : memref<8x8x256xf32, #tpu.memory_space<vmem>>, vector<1x8x256xf32>
    %150 = vector.shape_cast %149 : vector<1x8x256xf32> to vector<8x256xf32>
    %151 = arith.subf %150, %117 : vector<8x256xf32>
    %152 = arith.mulf %151, %151 : vector<8x256xf32>
    %153 = arith.addf %148, %152 : vector<8x256xf32>
    %c7_85 = arith.constant 7 : index
    %c0_86 = arith.constant 0 : index
    %c0_87 = arith.constant 0 : index
    %154 = vector.load %arg8[%c7_85, %c0_86, %c0_87] : memref<8x8x256xf32, #tpu.memory_space<vmem>>, vector<1x8x256xf32>
    %155 = vector.shape_cast %154 : vector<1x8x256xf32> to vector<8x256xf32>
    %156 = arith.subf %155, %117 : vector<8x256xf32>
    %157 = arith.mulf %156, %156 : vector<8x256xf32>
    %158 = arith.addf %153, %157 : vector<8x256xf32>
    %cst_88 = arith.constant 1.250000e-01 : f32
    %159 = vector.broadcast %cst_88 : f32 to vector<8x256xf32>
    %160 = arith.mulf %158, %159 : vector<8x256xf32>
    %cst_89 = arith.constant 9.99999974E-6 : f32
    %161 = vector.broadcast %cst_89 : f32 to vector<8x256xf32>
    %162 = arith.addf %160, %161 : vector<8x256xf32>
    %163 = math.rsqrt %162 : vector<8x256xf32>
    %c0_90 = arith.constant 0 : index
    %c0_91 = arith.constant 0 : index
    %c0_92 = arith.constant 0 : index
    %164 = vector.load %arg8[%c0_90, %c0_91, %c0_92] : memref<8x8x256xf32, #tpu.memory_space<vmem>>, vector<1x8x256xf32>
    %165 = vector.shape_cast %164 : vector<1x8x256xf32> to vector<8x256xf32>
    %166 = arith.subf %165, %117 : vector<8x256xf32>
    %167 = arith.mulf %166, %163 : vector<8x256xf32>
    %c0_93 = arith.constant 0 : index
    %168 = memref.load %arg5[%c0_93] : memref<8xf32, #tpu.memory_space<smem>>
    %169 = vector.broadcast %168 : f32 to vector<8x256xf32>
    %170 = arith.mulf %167, %169 : vector<8x256xf32>
    %c0_94 = arith.constant 0 : index
    %171 = memref.load %arg6[%c0_94] : memref<8xf32, #tpu.memory_space<smem>>
    %172 = vector.broadcast %171 : f32 to vector<8x256xf32>
    %173 = arith.addf %170, %172 : vector<8x256xf32>
    %c0_95 = arith.constant 0 : index
    %c0_96 = arith.constant 0 : index
    %c0_97 = arith.constant 0 : index
    %c0_98 = arith.constant 0 : index
    %174 = vector.load %arg7[%c0_95, %c0_96, %c0_97, %c0_98] : memref<1x8x8x256xf32, #tpu.memory_space<vmem>>, vector<1x1x8x256xf32>
    %175 = vector.shape_cast %174 : vector<1x1x8x256xf32> to vector<8x256xf32>
    %176 = vector.shape_cast %173 : vector<8x256xf32> to vector<1x1x8x256xf32>
    tpu.vector_store %arg7[%c0_95, %c0_96, %c0_97, %c0_98], %176 {strides = array<i32>} : memref<1x8x8x256xf32, #tpu.memory_space<vmem>>, vector<1x1x8x256xf32>,
    %c1_99 = arith.constant 1 : index
    %c0_100 = arith.constant 0 : index
    %c0_101 = arith.constant 0 : index
    %177 = vector.load %arg8[%c1_99, %c0_100, %c0_101] : memref<8x8x256xf32, #tpu.memory_space<vmem>>, vector<1x8x256xf32>
    %178 = vector.shape_cast %177 : vector<1x8x256xf32> to vector<8x256xf32>
    %179 = arith.subf %178, %117 : vector<8x256xf32>
    %180 = arith.mulf %179, %163 : vector<8x256xf32>
    %c1_102 = arith.constant 1 : index
    %181 = memref.load %arg5[%c1_102] : memref<8xf32, #tpu.memory_space<smem>>
    %182 = vector.broadcast %181 : f32 to vector<8x256xf32>
    %183 = arith.mulf %180, %182 : vector<8x256xf32>
    %c1_103 = arith.constant 1 : index
    %184 = memref.load %arg6[%c1_103] : memref<8xf32, #tpu.memory_space<smem>>
    %185 = vector.broadcast %184 : f32 to vector<8x256xf32>
    %186 = arith.addf %183, %185 : vector<8x256xf32>
    %c0_104 = arith.constant 0 : index
    %c1_105 = arith.constant 1 : index
    %c0_106 = arith.constant 0 : index
    %c0_107 = arith.constant 0 : index
    %187 = vector.load %arg7[%c0_104, %c1_105, %c0_106, %c0_107] : memref<1x8x8x256xf32, #tpu.memory_space<vmem>>, vector<1x1x8x256xf32>
    %188 = vector.shape_cast %187 : vector<1x1x8x256xf32> to vector<8x256xf32>
    %189 = vector.shape_cast %186 : vector<8x256xf32> to vector<1x1x8x256xf32>
    tpu.vector_store %arg7[%c0_104, %c1_105, %c0_106, %c0_107], %189 {strides = array<i32>} : memref<1x8x8x256xf32, #tpu.memory_space<vmem>>, vector<1x1x8x256xf32>,
    %c2_108 = arith.constant 2 : index
    %c0_109 = arith.constant 0 : index
    %c0_110 = arith.constant 0 : index
    %190 = vector.load %arg8[%c2_108, %c0_109, %c0_110] : memref<8x8x256xf32, #tpu.memory_space<vmem>>, vector<1x8x256xf32>
    %191 = vector.shape_cast %190 : vector<1x8x256xf32> to vector<8x256xf32>
    %192 = arith.subf %191, %117 : vector<8x256xf32>
    %193 = arith.mulf %192, %163 : vector<8x256xf32>
    %c2_111 = arith.constant 2 : index
    %194 = memref.load %arg5[%c2_111] : memref<8xf32, #tpu.memory_space<smem>>
    %195 = vector.broadcast %194 : f32 to vector<8x256xf32>
    %196 = arith.mulf %193, %195 : vector<8x256xf32>
    %c2_112 = arith.constant 2 : index
    %197 = memref.load %arg6[%c2_112] : memref<8xf32, #tpu.memory_space<smem>>
    %198 = vector.broadcast %197 : f32 to vector<8x256xf32>
    %199 = arith.addf %196, %198 : vector<8x256xf32>
    %c0_113 = arith.constant 0 : index
    %c2_114 = arith.constant 2 : index
    %c0_115 = arith.constant 0 : index
    %c0_116 = arith.constant 0 : index
    %200 = vector.load %arg7[%c0_113, %c2_114, %c0_115, %c0_116] : memref<1x8x8x256xf32, #tpu.memory_space<vmem>>, vector<1x1x8x256xf32>
    %201 = vector.shape_cast %200 : vector<1x1x8x256xf32> to vector<8x256xf32>
    %202 = vector.shape_cast %199 : vector<8x256xf32> to vector<1x1x8x256xf32>
    tpu.vector_store %arg7[%c0_113, %c2_114, %c0_115, %c0_116], %202 {strides = array<i32>} : memref<1x8x8x256xf32, #tpu.memory_space<vmem>>, vector<1x1x8x256xf32>,
    %c3_117 = arith.constant 3 : index
    %c0_118 = arith.constant 0 : index
    %c0_119 = arith.constant 0 : index
    %203 = vector.load %arg8[%c3_117, %c0_118, %c0_119] : memref<8x8x256xf32, #tpu.memory_space<vmem>>, vector<1x8x256xf32>
    %204 = vector.shape_cast %203 : vector<1x8x256xf32> to vector<8x256xf32>
    %205 = arith.subf %204, %117 : vector<8x256xf32>
    %206 = arith.mulf %205, %163 : vector<8x256xf32>
    %c3_120 = arith.constant 3 : index
    %207 = memref.load %arg5[%c3_120] : memref<8xf32, #tpu.memory_space<smem>>
    %208 = vector.broadcast %207 : f32 to vector<8x256xf32>
    %209 = arith.mulf %206, %208 : vector<8x256xf32>
    %c3_121 = arith.constant 3 : index
    %210 = memref.load %arg6[%c3_121] : memref<8xf32, #tpu.memory_space<smem>>
    %211 = vector.broadcast %210 : f32 to vector<8x256xf32>
    %212 = arith.addf %209, %211 : vector<8x256xf32>
    %c0_122 = arith.constant 0 : index
    %c3_123 = arith.constant 3 : index
    %c0_124 = arith.constant 0 : index
    %c0_125 = arith.constant 0 : index
    %213 = vector.load %arg7[%c0_122, %c3_123, %c0_124, %c0_125] : memref<1x8x8x256xf32, #tpu.memory_space<vmem>>, vector<1x1x8x256xf32>
    %214 = vector.shape_cast %213 : vector<1x1x8x256xf32> to vector<8x256xf32>
    %215 = vector.shape_cast %212 : vector<8x256xf32> to vector<1x1x8x256xf32>
    tpu.vector_store %arg7[%c0_122, %c3_123, %c0_124, %c0_125], %215 {strides = array<i32>} : memref<1x8x8x256xf32, #tpu.memory_space<vmem>>, vector<1x1x8x256xf32>,
    %c4_126 = arith.constant 4 : index
    %c0_127 = arith.constant 0 : index
    %c0_128 = arith.constant 0 : index
    %216 = vector.load %arg8[%c4_126, %c0_127, %c0_128] : memref<8x8x256xf32, #tpu.memory_space<vmem>>, vector<1x8x256xf32>
    %217 = vector.shape_cast %216 : vector<1x8x256xf32> to vector<8x256xf32>
    %218 = arith.subf %217, %117 : vector<8x256xf32>
    %219 = arith.mulf %218, %163 : vector<8x256xf32>
    %c4_129 = arith.constant 4 : index
    %220 = memref.load %arg5[%c4_129] : memref<8xf32, #tpu.memory_space<smem>>
    %221 = vector.broadcast %220 : f32 to vector<8x256xf32>
    %222 = arith.mulf %219, %221 : vector<8x256xf32>
    %c4_130 = arith.constant 4 : index
    %223 = memref.load %arg6[%c4_130] : memref<8xf32, #tpu.memory_space<smem>>
    %224 = vector.broadcast %223 : f32 to vector<8x256xf32>
    %225 = arith.addf %222, %224 : vector<8x256xf32>
    %c0_131 = arith.constant 0 : index
    %c4_132 = arith.constant 4 : index
    %c0_133 = arith.constant 0 : index
    %c0_134 = arith.constant 0 : index
    %226 = vector.load %arg7[%c0_131, %c4_132, %c0_133, %c0_134] : memref<1x8x8x256xf32, #tpu.memory_space<vmem>>, vector<1x1x8x256xf32>
    %227 = vector.shape_cast %226 : vector<1x1x8x256xf32> to vector<8x256xf32>
    %228 = vector.shape_cast %225 : vector<8x256xf32> to vector<1x1x8x256xf32>
    tpu.vector_store %arg7[%c0_131, %c4_132, %c0_133, %c0_134], %228 {strides = array<i32>} : memref<1x8x8x256xf32, #tpu.memory_space<vmem>>, vector<1x1x8x256xf32>,
    %c5_135 = arith.constant 5 : index
    %c0_136 = arith.constant 0 : index
    %c0_137 = arith.constant 0 : index
    %229 = vector.load %arg8[%c5_135, %c0_136, %c0_137] : memref<8x8x256xf32, #tpu.memory_space<vmem>>, vector<1x8x256xf32>
    %230 = vector.shape_cast %229 : vector<1x8x256xf32> to vector<8x256xf32>
    %231 = arith.subf %230, %117 : vector<8x256xf32>
    %232 = arith.mulf %231, %163 : vector<8x256xf32>
    %c5_138 = arith.constant 5 : index
    %233 = memref.load %arg5[%c5_138] : memref<8xf32, #tpu.memory_space<smem>>
    %234 = vector.broadcast %233 : f32 to vector<8x256xf32>
    %235 = arith.mulf %232, %234 : vector<8x256xf32>
    %c5_139 = arith.constant 5 : index
    %236 = memref.load %arg6[%c5_139] : memref<8xf32, #tpu.memory_space<smem>>
    %237 = vector.broadcast %236 : f32 to vector<8x256xf32>
    %238 = arith.addf %235, %237 : vector<8x256xf32>
    %c0_140 = arith.constant 0 : index
    %c5_141 = arith.constant 5 : index
    %c0_142 = arith.constant 0 : index
    %c0_143 = arith.constant 0 : index
    %239 = vector.load %arg7[%c0_140, %c5_141, %c0_142, %c0_143] : memref<1x8x8x256xf32, #tpu.memory_space<vmem>>, vector<1x1x8x256xf32>
    %240 = vector.shape_cast %239 : vector<1x1x8x256xf32> to vector<8x256xf32>
    %241 = vector.shape_cast %238 : vector<8x256xf32> to vector<1x1x8x256xf32>
    tpu.vector_store %arg7[%c0_140, %c5_141, %c0_142, %c0_143], %241 {strides = array<i32>} : memref<1x8x8x256xf32, #tpu.memory_space<vmem>>, vector<1x1x8x256xf32>,
    %c6_144 = arith.constant 6 : index
    %c0_145 = arith.constant 0 : index
    %c0_146 = arith.constant 0 : index
    %242 = vector.load %arg8[%c6_144, %c0_145, %c0_146] : memref<8x8x256xf32, #tpu.memory_space<vmem>>, vector<1x8x256xf32>
    %243 = vector.shape_cast %242 : vector<1x8x256xf32> to vector<8x256xf32>
    %244 = arith.subf %243, %117 : vector<8x256xf32>
    %245 = arith.mulf %244, %163 : vector<8x256xf32>
    %c6_147 = arith.constant 6 : index
    %246 = memref.load %arg5[%c6_147] : memref<8xf32, #tpu.memory_space<smem>>
    %247 = vector.broadcast %246 : f32 to vector<8x256xf32>
    %248 = arith.mulf %245, %247 : vector<8x256xf32>
    %c6_148 = arith.constant 6 : index
    %249 = memref.load %arg6[%c6_148] : memref<8xf32, #tpu.memory_space<smem>>
    %250 = vector.broadcast %249 : f32 to vector<8x256xf32>
    %251 = arith.addf %248, %250 : vector<8x256xf32>
    %c0_149 = arith.constant 0 : index
    %c6_150 = arith.constant 6 : index
    %c0_151 = arith.constant 0 : index
    %c0_152 = arith.constant 0 : index
    %252 = vector.load %arg7[%c0_149, %c6_150, %c0_151, %c0_152] : memref<1x8x8x256xf32, #tpu.memory_space<vmem>>, vector<1x1x8x256xf32>
    %253 = vector.shape_cast %252 : vector<1x1x8x256xf32> to vector<8x256xf32>
    %254 = vector.shape_cast %251 : vector<8x256xf32> to vector<1x1x8x256xf32>
    tpu.vector_store %arg7[%c0_149, %c6_150, %c0_151, %c0_152], %254 {strides = array<i32>} : memref<1x8x8x256xf32, #tpu.memory_space<vmem>>, vector<1x1x8x256xf32>,
    %c7_153 = arith.constant 7 : index
    %c0_154 = arith.constant 0 : index
    %c0_155 = arith.constant 0 : index
    %255 = vector.load %arg8[%c7_153, %c0_154, %c0_155] : memref<8x8x256xf32, #tpu.memory_space<vmem>>, vector<1x8x256xf32>
    %256 = vector.shape_cast %255 : vector<1x8x256xf32> to vector<8x256xf32>
    %257 = arith.subf %256, %117 : vector<8x256xf32>
    %258 = arith.mulf %257, %163 : vector<8x256xf32>
    %c7_156 = arith.constant 7 : index
    %259 = memref.load %arg5[%c7_156] : memref<8xf32, #tpu.memory_space<smem>>
    %260 = vector.broadcast %259 : f32 to vector<8x256xf32>
    %261 = arith.mulf %258, %260 : vector<8x256xf32>
    %c7_157 = arith.constant 7 : index
    %262 = memref.load %arg6[%c7_157] : memref<8xf32, #tpu.memory_space<smem>>
    %263 = vector.broadcast %262 : f32 to vector<8x256xf32>
    %264 = arith.addf %261, %263 : vector<8x256xf32>
    %c0_158 = arith.constant 0 : index
    %c7_159 = arith.constant 7 : index
    %c0_160 = arith.constant 0 : index
    %c0_161 = arith.constant 0 : index
    %265 = vector.load %arg7[%c0_158, %c7_159, %c0_160, %c0_161] : memref<1x8x8x256xf32, #tpu.memory_space<vmem>>, vector<1x1x8x256xf32>
    %266 = vector.shape_cast %265 : vector<1x1x8x256xf32> to vector<8x256xf32>
    %267 = vector.shape_cast %264 : vector<8x256xf32> to vector<1x1x8x256xf32>
    tpu.vector_store %arg7[%c0_158, %c7_159, %c0_160, %c0_161], %267 {strides = array<i32>} : memref<1x8x8x256xf32, #tpu.memory_space<vmem>>, vector<1x1x8x256xf32>,
    return
  }
  func.func @transform_0(%arg0: i32) -> (i32, i32, i32) {
    %c0_i32 = arith.constant 0 : i32
    %c0_i32_0 = arith.constant 0 : i32
    %c0_i32_1 = arith.constant 0 : i32
    return %arg0, %c0_i32, %c0_i32_0 : i32, i32, i32
  }
  func.func @transform_1(%arg0: i32) -> (i32, i32) {
    %c0_i32 = arith.constant 0 : i32
    %c0_i32_0 = arith.constant 0 : i32
    %c0_i32_1 = arith.constant 0 : i32
    return %c0_i32, %c0_i32_0 : i32, i32
  }
  func.func @transform_2(%arg0: i32) -> (i32, i32) {
    %c0_i32 = arith.constant 0 : i32
    %c0_i32_0 = arith.constant 0 : i32
    %c0_i32_1 = arith.constant 0 : i32
    return %c0_i32, %c0_i32_0 : i32, i32
  }
  func.func @transform_3(%arg0: i32) -> (i32, i32) {
    %c0_i32 = arith.constant 0 : i32
    %c0_i32_0 = arith.constant 0 : i32
    %c0_i32_1 = arith.constant 0 : i32
    return %c0_i32, %c0_i32_0 : i32, i32
  }
  func.func @transform_4(%arg0: i32) -> i32 {
    %c0_i32 = arith.constant 0 : i32
    %c0_i32_0 = arith.constant 0 : i32
    return %c0_i32 : i32
  }
  func.func @transform_5(%arg0: i32) -> i32 {
    %c0_i32 = arith.constant 0 : i32
    %c0_i32_0 = arith.constant 0 : i32
    return %c0_i32 : i32
  }
  func.func @transform_6(%arg0: i32) -> (i32, i32, i32, i32) {
    %c0_i32 = arith.constant 0 : i32
    %c0_i32_0 = arith.constant 0 : i32
    %c0_i32_1 = arith.constant 0 : i32
    %c0_i32_2 = arith.constant 0 : i32
    return %arg0, %c0_i32, %c0_i32_0, %c0_i32_1 : i32, i32, i32, i32
  }
}

</mosaic_0001>

<llo_original>
// kernel: tpu_custom_call.1
$region0: #{tpu_custom_call.1}
  #allocation0 [shape = 'u32[]', space=smem, size = 0x4, offset = 0x4, fixed_abs, tag = 'smem constant byte address 0x4 - core index']
  #allocation1 [shape = 'u32[144,128]{1,0:T(1,128)}', space=vmem, size = 0x12000, scoped, tag = 'internal scratch']
  #allocation2 [shape = 'f32[8,8,256]{2,1,0:T(8,128)}', space=vmem, size = 0x10000, scoped, tag = 'scratch operand']
  %s0 = inlined_call_operand.vmem [shape: f32[2,8,256], index: 0, kind: input, shape index: {}]
  %s1 = inlined_call_operand.vmem [shape: f32[32,1], index: 1, kind: input, shape index: {}]
  %s2 = inlined_call_operand.vmem [shape: f32[32,1], index: 2, kind: input, shape index: {}]
  %s3 = inlined_call_operand.vmem [shape: f32[8,32], index: 3, kind: input, shape index: {}]
  %s4 = inlined_call_operand.vmem [shape: f32[8], index: 4, kind: input, shape index: {}]
  %s5 = inlined_call_operand.vmem [shape: f32[8], index: 5, kind: input, shape index: {}]
  %s6 = inlined_call_operand.hbm [shape: f32[2,8,8,256], index: 6, kind: output, shape index: {}]
  %s7 = sld [smem:[#allocation0]]
  $region65: #{tpu_custom_call.1} parent=0
    _
  %s9 = ssub.s32 1, %s7
  %s10 = scalar_select 0, %s9, %s7
  $region1: #{tpu_custom_call.1} parent=0
    #allocation3 [shape = 'u8[512]{0}', space=smem, size = 0x200, scoped, tag = 'input window, operand 4, single buffered']
    #allocation4 [shape = 's32[2]{0}', space=sflag, size = 0x8, scoped, tag = 'scoped memory for tpu_custom_call.1']
    #allocation5 [shape = 's32[2]{0}', space=sflag, size = 0x8, scoped, tag = 'scoped memory for tpu_custom_call.1']
    #allocation6 [shape = 'u8[512]{0}', space=smem, size = 0x200, scoped, tag = 'input window, operand 5, single buffered']
    #allocation7 [shape = 's32[1]{0}', space=sflag, size = 0x4, scoped, tag = 'scoped memory for tpu_custom_call.1']
    #allocation8 [shape = 'u8[131072]{0}', space=vmem, size = 0x20000, scoped, tag = 'output window, operand 0']
    %11 = vsyncpa [#allocation5], 0
    %12 = vsyncpa [#allocation7], 0
    %13 = vsyncpa [#allocation4], 0
    %s14 = scalar_lea.sflag [#allocation4], 1
    %15 = vsyncpa %s14, 0
    loop: start=0, step=1, limit=4
    $region2: #{tpu_custom_call.1} parent=1 // loop_pre_header
      _
    $region3: #{tpu_custom_call.1} parent=1 // loop_header
      %s17 = sphi 0, %s21
      %p18 = scmp.ge.s32.totalorder %s17, 4
      %s27 = sphi 0, %s29
      %s30 = sphi 0, %s27
      %s31 = sphi 0, %s30
      %s47 = sphi 0, %s31
      %s51 = sphi 0, %s51
      %s53 = sphi 0, %s51
      %s54 = sphi 0, %s53
      %s68 = sphi 0, %s54
      %s72 = sphi 0, %s72
      %s74 = sphi 0, %s72
      %s75 = sphi 0, %s74
      %s89 = sphi 0, %s75
      %s93 = sphi 0, %s93
      %s95 = sphi 0, %s93
      %s96 = sphi 0, %s95
      %s110 = sphi 0, %s96
      %s114 = sphi 0, %s114
      %s116 = sphi 0, %s114
      %s117 = sphi 0, %s116
      %s131 = sphi 0, %s117
      %s135 = sphi 0, %s135
      %s137 = sphi 0, %s135
      %s138 = sphi 0, %s137
      %s152 = sphi 0, %s138
      %s158 = sphi 0, %s160
      %s161 = sphi 0, %s158
      %s162 = sphi 0, %s161
      %s178 = sphi 0, %s162
    $region4: #{tpu_custom_call.1} parent=1 // loop_header_branch
      %20 = sbr.rel (%p18) target = $region8
    $region5: #{tpu_custom_call.1} parent=1 // loop_body
      %s22 = ssub.s32 %s17, 1
      %s23 = ssub.s32 %s17, 2
      %s24 = sadd.s32 %s17, 1
      %s25 = ssub.s32 %s17, %s24
      %p26 = scmp.eq.s32.totalorder %s25, 0
      %s28 = sadd.s32 %s27, 1
      %s29 = scalar_select %p26, %s27, %s28
      %p32 = pneg %p26
      %p33 = scmp.eq.s32.totalorder %s17, 1
      %p34 = por %p32, %p33
      %p35 = scmp.ne.s32.totalorder %s27, %s30
      %p36 = scmp.eq.s32.totalorder %s17, 0
      %p37 = por %p35, %p36
      %p38 = scmp.ne.s32.totalorder %s27, %s30
      %p39 = scmp.eq.s32.totalorder %s22, 1
      %p40 = por %p38, %p39
      %p41 = scmp.ne.s32.totalorder %s30, %s31
      %p42 = scmp.eq.s32.totalorder %s22, 0
      %p43 = por %p41, %p42
      %p44 = scmp.ne.s32.totalorder %s30, %s31
      %p45 = scmp.eq.s32.totalorder %s23, 1
      %p46 = por %p44, %p45
      %p48 = scmp.ne.s32.totalorder %s31, %s47
      %p49 = scmp.eq.s32.totalorder %s23, 0
      %p50 = por %p48, %p49
      %s52 = sadd.s32 %s51, 1
      %p55 = scmp.eq.s32.totalorder %s17, 1
      %p56 = scmp.ne.s32.totalorder %s51, %s53
      %p57 = scmp.eq.s32.totalorder %s17, 0
      %p58 = por %p56, %p57
      %p59 = scmp.ne.s32.totalorder %s51, %s53
      %p60 = scmp.eq.s32.totalorder %s22, 1
      %p61 = por %p59, %p60
      %p62 = scmp.ne.s32.totalorder %s53, %s54
      %p63 = scmp.eq.s32.totalorder %s22, 0
      %p64 = por %p62, %p63
      %p65 = scmp.ne.s32.totalorder %s53, %s54
      %p66 = scmp.eq.s32.totalorder %s23, 1
      %p67 = por %p65, %p66
      %p69 = scmp.ne.s32.totalorder %s54, %s68
      %p70 = scmp.eq.s32.totalorder %s23, 0
      %p71 = por %p69, %p70
      %s73 = sadd.s32 %s72, 1
      %p76 = scmp.eq.s32.totalorder %s17, 1
      %p77 = scmp.ne.s32.totalorder %s72, %s74
      %p78 = scmp.eq.s32.totalorder %s17, 0
      %p79 = por %p77, %p78
      %p80 = scmp.ne.s32.totalorder %s72, %s74
      %p81 = scmp.eq.s32.totalorder %s22, 1
      %p82 = por %p80, %p81
      %p83 = scmp.ne.s32.totalorder %s74, %s75
      %p84 = scmp.eq.s32.totalorder %s22, 0
      %p85 = por %p83, %p84
      %p86 = scmp.ne.s32.totalorder %s74, %s75
      %p87 = scmp.eq.s32.totalorder %s23, 1
      %p88 = por %p86, %p87
      %p90 = scmp.ne.s32.totalorder %s75, %s89
      %p91 = scmp.eq.s32.totalorder %s23, 0
      %p92 = por %p90, %p91
      %s94 = sadd.s32 %s93, 1
      %p97 = scmp.eq.s32.totalorder %s17, 1
      %p98 = scmp.ne.s32.totalorder %s93, %s95
      %p99 = scmp.eq.s32.totalorder %s17, 0
      %p100 = por %p98, %p99
      %p101 = scmp.ne.s32.totalorder %s93, %s95
      %p102 = scmp.eq.s32.totalorder %s22, 1
      %p103 = por %p101, %p102
      %p104 = scmp.ne.s32.totalorder %s95, %s96
      %p105 = scmp.eq.s32.totalorder %s22, 0
      %p106 = por %p104, %p105
      %p107 = scmp.ne.s32.totalorder %s95, %s96
      %p108 = scmp.eq.s32.totalorder %s23, 1
      %p109 = por %p107, %p108
      %p111 = scmp.ne.s32.totalorder %s96, %s110
      %p112 = scmp.eq.s32.totalorder %s23, 0
      %p113 = por %p111, %p112
      %s115 = sadd.s32 %s114, 1
      %p118 = scmp.eq.s32.totalorder %s17, 1
      %p119 = scmp.ne.s32.totalorder %s114, %s116
      %p120 = scmp.eq.s32.totalorder %s17, 0
      %p121 = por %p119, %p120
      %p122 = scmp.ne.s32.totalorder %s114, %s116
      %p123 = scmp.eq.s32.totalorder %s22, 1
      %p124 = por %p122, %p123
      %p125 = scmp.ne.s32.totalorder %s116, %s117
      %p126 = scmp.eq.s32.totalorder %s22, 0
      %p127 = por %p125, %p126
      %p128 = scmp.ne.s32.totalorder %s116, %s117
      %p129 = scmp.eq.s32.totalorder %s23, 1
      %p130 = por %p128, %p129
      %p132 = scmp.ne.s32.totalorder %s117, %s131
      %p133 = scmp.eq.s32.totalorder %s23, 0
      %p134 = por %p132, %p133
      %s136 = sadd.s32 %s135, 1
      %p139 = scmp.eq.s32.totalorder %s17, 1
      %p140 = scmp.ne.s32.totalorder %s135, %s137
      %p141 = scmp.eq.s32.totalorder %s17, 0
      %p142 = por %p140, %p141
      %p143 = scmp.ne.s32.totalorder %s135, %s137
      %p144 = scmp.eq.s32.totalorder %s22, 1
      %p145 = por %p143, %p144
      %p146 = scmp.ne.s32.totalorder %s137, %s138
      %p147 = scmp.eq.s32.totalorder %s22, 0
      %p148 = por %p146, %p147
      %p149 = scmp.ne.s32.totalorder %s137, %s138
      %p150 = scmp.eq.s32.totalorder %s23, 1
      %p151 = por %p149, %p150
      %p153 = scmp.ne.s32.totalorder %s138, %s152
      %p154 = scmp.eq.s32.totalorder %s23, 0
      %p155 = por %p153, %p154
      %s156 = ssub.s32 %s17, %s24
      %p157 = scmp.eq.s32.totalorder %s156, 0
      %s159 = sadd.s32 %s158, 1
      %s160 = scalar_select %p157, %s158, %s159
      %p163 = pneg %p157
      %p164 = scmp.eq.s32.totalorder %s17, 1
      %p165 = por %p163, %p164
      %p166 = scmp.ne.s32.totalorder %s158, %s161
      %p167 = scmp.eq.s32.totalorder %s17, 0
      %p168 = por %p166, %p167
      %p169 = scmp.ne.s32.totalorder %s158, %s161
      %p170 = scmp.eq.s32.totalorder %s22, 1
      %p171 = por %p169, %p170
      %p172 = scmp.ne.s32.totalorder %s161, %s162
      %p173 = scmp.eq.s32.totalorder %s22, 0
      %p174 = por %p172, %p173
      %p175 = scmp.ne.s32.totalorder %s161, %s162
      %p176 = scmp.eq.s32.totalorder %s23, 1
      %p177 = por %p175, %p176
      %p179 = scmp.ne.s32.totalorder %s162, %s178
      %p180 = scmp.eq.s32.totalorder %s23, 0
      %p181 = por %p179, %p180
      %p182 = scmp.le.s32.totalorder 1, %s17
      %p183 = scmp.lt.s32.totalorder %s17, 3
      %p184 = pnand %p182, %p183
      %p185 = pneg %p184
      // Predicated region
      $region9: #{tpu_custom_call.1} parent=5 // pred_check
        _
      $region10: #{tpu_custom_call.1} parent=5 // pred_check_branch
        %187 = sbr.rel (%p184) target = $region12
      $region11: #{tpu_custom_call.1} parent=5 // pred_region
        %s188 = ssub.s32 %s17, 1
        // Predicated region
        $region13: #{tpu_custom_call.1} parent=11 // pred_check
          %p189 = pneg %p64
        $region14: #{tpu_custom_call.1} parent=11 // pred_check_branch
          %191 = sbr.rel (%p189) target = $region16
        $region15: #{tpu_custom_call.1} parent=11 // pred_region
          _
        $region16: #{tpu_custom_call.1} parent=11 // pred_fallthru
          _
        // Predicated region
        $region17: #{tpu_custom_call.1} parent=11 // pred_check
          %p192 = pneg %p85
        $region18: #{tpu_custom_call.1} parent=11 // pred_check_branch
          %194 = sbr.rel (%p192) target = $region20
        $region19: #{tpu_custom_call.1} parent=11 // pred_region
          _
        $region20: #{tpu_custom_call.1} parent=11 // pred_fallthru
          _
        // Predicated region
        $region21: #{tpu_custom_call.1} parent=11 // pred_check
          %p195 = pneg %p106
        $region22: #{tpu_custom_call.1} parent=11 // pred_check_branch
          %197 = sbr.rel (%p195) target = $region24
        $region23: #{tpu_custom_call.1} parent=11 // pred_region
          _
        $region24: #{tpu_custom_call.1} parent=11 // pred_fallthru
          _
        // Predicated region
        $region25: #{tpu_custom_call.1} parent=11 // pred_check
          %p198 = pneg %p127
        $region26: #{tpu_custom_call.1} parent=11 // pred_check_branch
          %200 = sbr.rel (%p198) target = $region28
        $region27: #{tpu_custom_call.1} parent=11 // pred_region
          %s202 = ssub.s32 16, 16
          %203 = vsyncadd [#allocation5], %s202
          %s205 = sshll.u32 %s4, 4
          %s206 = int_to_ptr.vmem [resolvable:$true] %s205
          %208 = dma.vmem_to_smem %s206, 16, [#allocation3], [#allocation5]
        $region28: #{tpu_custom_call.1} parent=11 // pred_fallthru
          _
        // Predicated region
        $region29: #{tpu_custom_call.1} parent=11 // pred_check
          %p209 = pneg %p148
        $region30: #{tpu_custom_call.1} parent=11 // pred_check_branch
          %211 = sbr.rel (%p209) target = $region32
        $region31: #{tpu_custom_call.1} parent=11 // pred_region
          %s213 = ssub.s32 16, 16
          %214 = vsyncadd [#allocation7], %s213
          %s216 = sshll.u32 %s5, 4
          %s217 = int_to_ptr.vmem [resolvable:$true] %s216
          %219 = dma.vmem_to_smem %s217, 16, [#allocation6], [#allocation7]
        $region32: #{tpu_custom_call.1} parent=11 // pred_fallthru
          _
      $region12: #{tpu_custom_call.1} parent=5 // pred_fallthru
        _
      %p220 = scmp.lt.s32.totalorder %s17, 2
      // Predicated region
      $region33: #{tpu_custom_call.1} parent=5 // pred_check
        %p221 = pneg %p220
      $region34: #{tpu_custom_call.1} parent=5 // pred_check_branch
        %223 = sbr.rel (%p221) target = $region36
      $region35: #{tpu_custom_call.1} parent=5 // pred_region
        // Predicated region
        $region37: #{tpu_custom_call.1} parent=35 // pred_check
          %p224 = pneg %p37
        $region38: #{tpu_custom_call.1} parent=35 // pred_check_branch
          %226 = sbr.rel (%p224) target = $region40
        $region39: #{tpu_custom_call.1} parent=35 // pred_region
          %p227 = scmp.lt.s32.totalorder %s17, 1
          %s228 = scalar_select %p227, %s17, 1
          %s229 = smul.addr %s228, 2
          %s230 = smul.addr %s229, 8
          %s231 = scalar_lea.vmem %s0, %s230
        $region40: #{tpu_custom_call.1} parent=35 // pred_fallthru
          _
      $region36: #{tpu_custom_call.1} parent=5 // pred_fallthru
        _
      %p232 = scmp.le.s32.totalorder 1, %s17
      %p233 = scmp.lt.s32.totalorder %s17, 3
      %p234 = pnand %p232, %p233
      %p235 = pneg %p234
      // Predicated region
      $region41: #{tpu_custom_call.1} parent=5 // pred_check
        _
      $region42: #{tpu_custom_call.1} parent=5 // pred_check_branch
        %237 = sbr.rel (%p234) target = $region44
      $region43: #{tpu_custom_call.1} parent=5 // pred_region
        %s238 = ssub.s32 %s17, 1
        // Predicated region
        $region45: #{tpu_custom_call.1} parent=43 // pred_check
          %p239 = pneg %p127
        $region46: #{tpu_custom_call.1} parent=43 // pred_check_branch
          %241 = sbr.rel (%p239) target = $region48
        $region47: #{tpu_custom_call.1} parent=43 // pred_region
          %242 = dma.done [#allocation5], 16
        $region48: #{tpu_custom_call.1} parent=43 // pred_fallthru
          _
        // Predicated region
        $region49: #{tpu_custom_call.1} parent=43 // pred_check
          %p243 = pneg %p148
        $region50: #{tpu_custom_call.1} parent=43 // pred_check_branch
          %245 = sbr.rel (%p243) target = $region52
        $region51: #{tpu_custom_call.1} parent=43 // pred_region
          %246 = dma.done [#allocation7], 16
        $region52: #{tpu_custom_call.1} parent=43 // pred_fallthru
          _
        %247 = sfence
        %p248 = scmp.lt.s32.totalorder %s22, 1
        %s249 = scalar_select %p248, %s22, 1
        %s250 = smul.addr %s249, 2
        %s251 = smul.addr %s250, 8
        %s252 = scalar_lea.vmem %s0, %s251
        %p253 = pneg %p43
        %p254 = pneg %p40
        %p255 = pneg %p64
        %p256 = pneg %p61
        %p257 = pneg %p85
        %p258 = pneg %p82
        %p259 = pneg %p106
        %p260 = pneg %p103
        %p261 = pneg %p127
        %p262 = pneg %p124
        %p263 = pneg %p148
        %p264 = pneg %p145
        %p265 = pneg %p174
        %p266 = pneg %p171
        %s267 = sand.u32 %s161, 1
        %s268 = scalar_lea.sflag [#allocation4], %s267
        %s269 = sand.u32 %s161, 1
        %s270 = smul.addr %s269, 128
        %s271 = scalar_lea.vmem [#allocation8], %s270
        %p272 = scmp.lt.s32.totalorder %s22, 1
        %s273 = scalar_select %p272, %s22, 1
        %s274 = smul.addr %s273, 2
        %s275 = smul.addr %s274, 8
        %s276 = scalar_lea.vmem %s0, %s275
        %v277 = vld [vmem:[%s1] sm:$0xff]
        %v278 = vld [vmem:[%s1 + $0x8] sm:$0xff]
        %v279 = vld [vmem:[%s1 + $0x10] sm:$0xff]
        %v280 = vld [vmem:[%s1 + $0x18] sm:$0xff]
        %v281 = vld [vmem:[%s2] sm:$0xff]
        %v282 = vld [vmem:[%s2 + $0x8] sm:$0xff]
        %v283 = vld [vmem:[%s2 + $0x10] sm:$0xff]
        %v284 = vld [vmem:[%s2 + $0x18] sm:$0xff]
        %v285 = vld [vmem:[%s3] sm:$0xff]
        %v286 = vld [vmem:[%s276] ss:$8 sm:$0x3]
        %v288 = vlaneseq
        %v289 = vshrl.u32 %v288, 7
        %v290 = vsub.s32 0, %v289
        %v291 = vrot.slane %v286, %v290
        %v292 = vlaneseq
        %v293 = vshrl.u32 %v292, 7
        %v294 = vsub.s32 1, %v293
        %v295 = vrot.slane %v286, %v294
        %299 = vset.pattern.permute.xlu0 0
        %300 = vperm.xlu0 %299, %v277
        %v301 = vpop.permute.xlu0 %300
        %304 = vset.pattern.permute.xlu0 0
        %305 = vperm.xlu0 %304, %v278
        %v306 = vpop.permute.xlu0 %305
        %309 = vset.pattern.permute.xlu0 0
        %310 = vperm.xlu0 %309, %v279
        %v311 = vpop.permute.xlu0 %310
        %314 = vset.pattern.permute.xlu0 0
        %315 = vperm.xlu0 %314, %v280
        %v316 = vpop.permute.xlu0 %315
        %v318 = vmul.f32 %v291, %v301
        %v319 = vmul.f32 %v295, %v301
        %v320 = vmul.f32 %v291, %v306
        %v321 = vmul.f32 %v295, %v306
        %v322 = vmul.f32 %v291, %v311
        %v323 = vmul.f32 %v295, %v311
        %v324 = vmul.f32 %v291, %v316
        %v325 = vmul.f32 %v295, %v316
        %327 = vset.pattern.permute.xlu0 0
        %328 = vperm.xlu0 %327, %v281
        %v329 = vpop.permute.xlu0 %328
        %332 = vset.pattern.permute.xlu0 0
        %333 = vperm.xlu0 %332, %v282
        %v334 = vpop.permute.xlu0 %333
        %337 = vset.pattern.permute.xlu0 0
        %338 = vperm.xlu0 %337, %v283
        %v339 = vpop.permute.xlu0 %338
        %342 = vset.pattern.permute.xlu0 0
        %343 = vperm.xlu0 %342, %v284
        %v344 = vpop.permute.xlu0 %343
        %v346 = vadd.f32 %v318, %v329
        %v347 = vadd.f32 %v319, %v329
        %v348 = vadd.f32 %v320, %v334
        %v349 = vadd.f32 %v321, %v334
        %v350 = vadd.f32 %v322, %v339
        %v351 = vadd.f32 %v323, %v339
        %v352 = vadd.f32 %v324, %v344
        %v353 = vadd.f32 %v325, %v344
        %v354 = vmax.f32 %v346, 0.0
        %v355 = vmax.f32 %v347, 0.0
        %v356 = vmax.f32 %v348, 0.0
        %v357 = vmax.f32 %v349, 0.0
        %v358 = vmax.f32 %v350, 0.0
        %v359 = vmax.f32 %v351, 0.0
        %v360 = vmax.f32 %v352, 0.0
        %v361 = vmax.f32 %v353, 0.0
        %vm362 = vcmask 261120
        %v364 = vsel %vm362, %v285, 0
        %366 = vmatprep.subr.mxu0 %v355
        %367 = vmatpush1.msra.mxu0 %v354
        %368 = vmatprep.subr.mxu0 %v357
        %369 = vmatpush1.msra.mxu0 %v356
        %370 = vmatprep.subr.mxu0 %v359
        %371 = vmatpush1.msra.mxu0 %v358
        %372 = vmatprep.subr.mxu0 %v361
        %373 = vmatpush1.msra.mxu0 %v360
        %374 = vmatprep.subr.mxu0 0.0
        %375 = vmatpush1.msra.mxu0 0.0
        %376 = vmatprep.subr.mxu0 0.0
        %377 = vmatpush1.msra.mxu0 0.0
        %378 = vmatprep.subr.mxu0 0.0
        %379 = vmatpush1.msra.mxu0 0.0
        %380 = vmatprep.subr.mxu0 0.0
        %381 = vmatpush1.msra.mxu0 0.0
        %382 = vmatprep.subr.mxu0 0.0
        %383 = vmatpush1.msra.mxu0 0.0
        %384 = vmatprep.subr.mxu0 0.0
        %385 = vmatpush1.msra.mxu0 0.0
        %386 = vmatprep.subr.mxu0 0.0
        %387 = vmatpush1.msra.mxu0 0.0
        %388 = vmatprep.subr.mxu0 0.0
        %389 = vmatpush1.msra.mxu0 0.0
        %390 = vmatprep.subr.mxu0 0.0
        %391 = vmatpush1.msra.mxu0 0.0
        %392 = vmatprep.subr.mxu0 0.0
        %393 = vmatpush1.msra.mxu0 0.0
        %394 = vmatprep.subr.mxu0 0.0
        %395 = vmatpush1.msra.mxu0 0.0
        %396 = vmatprep.subr.mxu0 0.0
        %397 = vmatpush1.msra.mxu0 0.0
        %398 = vmatprep.subr.mxu0 0.0
        %399 = vmatpush1.msra.mxu0 0.0
        %400 = vmatprep.subr.mxu0 0.0
        %401 = vmatpush1.msra.mxu0 0.0
        %402 = vmatprep.subr.mxu0 0.0
        %403 = vmatpush1.msra.mxu0 0.0
        %404 = vmatprep.subr.mxu0 0.0
        %405 = vmatpush1.msra.mxu0 0.0
        %406 = vmatprep.subr.mxu0 0.0
        %407 = vmatpush1.msra.mxu0 0.0
        %408 = vmatprep.subr.mxu0 0.0
        %409 = vmatpush1.msra.mxu0 0.0
        %410 = vmatprep.subr.mxu0 0.0
        %411 = vmatpush1.msra.mxu0 0.0
        %412 = vmatprep.subr.mxu0 0.0
        %413 = vmatpush1.msra.mxu0 0.0
        %414 = vmatprep.subr.mxu0 0.0
        %415 = vmatpush1.msra.mxu0 0.0
        %416 = vmatprep.subr.mxu0 0.0
        %417 = vmatpush1.msra.mxu0 0.0
        %418 = vmatprep.subr.mxu0 0.0
        %419 = vmatpush1.msra.mxu0 0.0
        %420 = vmatprep.subr.mxu0 0.0
        %421 = vmatpush1.msra.mxu0 0.0
        %422 = vmatprep.subr.mxu0 0.0
        %423 = vmatpush1.msra.mxu0 0.0
        %424 = vmatprep.subr.mxu0 0.0
        %425 = vmatpush1.msra.mxu0 0.0
        %426 = vmatprep.subr.mxu0 0.0
        %427 = vmatpush1.msra.mxu0 0.0
        %428 = vmatprep.subr.mxu0 0.0
        %429 = vmatpush1.msra.mxu0 0.0
        %430 = vmatprep.mubr.f32.mxu0 0.0
        %431 = vmatmul.mubr.f32.gmra.mrb[0].mxu0 %v364
        %v432 = vpop.f32.mrb[0].mxu0
        %v433 = vadd.f32 0.0, %v432
        %v434 = vpop.f32.mrb[0].mxu0
        %v435 = vadd.f32 0.0, %v434
        %436 = vdwg.mxu0
        %437 = vst [vmem:[#allocation2] sm:$0xff] %v433
        %438 = vst [vmem:[#allocation2 + $0x8] sm:$0xff] %v435
        %v439 = vadd.f32 %v433, 0.0
        %v440 = vadd.f32 %v435, 0.0
        %s441 = scalar_lea.vmem %s276, 1
        %v442 = vld [vmem:[%s441] ss:$8 sm:$0x3]
        %v444 = vlaneseq
        %v445 = vshrl.u32 %v444, 7
        %v446 = vsub.s32 0, %v445
        %v447 = vrot.slane %v442, %v446
        %v448 = vlaneseq
        %v449 = vshrl.u32 %v448, 7
        %v450 = vsub.s32 1, %v449
        %v451 = vrot.slane %v442, %v450
        %v454 = vmul.f32 %v447, %v301
        %v455 = vmul.f32 %v451, %v301
        %v456 = vmul.f32 %v447, %v306
        %v457 = vmul.f32 %v451, %v306
        %v458 = vmul.f32 %v447, %v311
        %v459 = vmul.f32 %v451, %v311
        %v460 = vmul.f32 %v447, %v316
        %v461 = vmul.f32 %v451, %v316
        %v462 = vadd.f32 %v454, %v329
        %v463 = vadd.f32 %v455, %v329
        %v464 = vadd.f32 %v456, %v334
        %v465 = vadd.f32 %v457, %v334
        %v466 = vadd.f32 %v458, %v339
        %v467 = vadd.f32 %v459, %v339
        %v468 = vadd.f32 %v460, %v344
        %v469 = vadd.f32 %v461, %v344
        %v470 = vmax.f32 %v462, 0.0
        %v471 = vmax.f32 %v463, 0.0
        %v472 = vmax.f32 %v464, 0.0
        %v473 = vmax.f32 %v465, 0.0
        %v474 = vmax.f32 %v466, 0.0
        %v475 = vmax.f32 %v467, 0.0
        %v476 = vmax.f32 %v468, 0.0
        %v477 = vmax.f32 %v469, 0.0
        %478 = vmatprep.subr.mxu0 %v471
        %479 = vmatpush1.msra.mxu0 %v470
        %480 = vmatprep.subr.mxu0 %v473
        %481 = vmatpush1.msra.mxu0 %v472
        %482 = vmatprep.subr.mxu0 %v475
        %483 = vmatpush1.msra.mxu0 %v474
        %484 = vmatprep.subr.mxu0 %v477
        %485 = vmatpush1.msra.mxu0 %v476
        %486 = vmatprep.subr.mxu0 0.0
        %487 = vmatpush1.msra.mxu0 0.0
        %488 = vmatprep.subr.mxu0 0.0
        %489 = vmatpush1.msra.mxu0 0.0
        %490 = vmatprep.subr.mxu0 0.0
        %491 = vmatpush1.msra.mxu0 0.0
        %492 = vmatprep.subr.mxu0 0.0
        %493 = vmatpush1.msra.mxu0 0.0
        %494 = vmatprep.subr.mxu0 0.0
        %495 = vmatpush1.msra.mxu0 0.0
        %496 = vmatprep.subr.mxu0 0.0
        %497 = vmatpush1.msra.mxu0 0.0
        %498 = vmatprep.subr.mxu0 0.0
        %499 = vmatpush1.msra.mxu0 0.0
        %500 = vmatprep.subr.mxu0 0.0
        %501 = vmatpush1.msra.mxu0 0.0
        %502 = vmatprep.subr.mxu0 0.0
        %503 = vmatpush1.msra.mxu0 0.0
        %504 = vmatprep.subr.mxu0 0.0
        %505 = vmatpush1.msra.mxu0 0.0
        %506 = vmatprep.subr.mxu0 0.0
        %507 = vmatpush1.msra.mxu0 0.0
        %508 = vmatprep.subr.mxu0 0.0
        %509 = vmatpush1.msra.mxu0 0.0
        %510 = vmatprep.subr.mxu0 0.0
        %511 = vmatpush1.msra.mxu0 0.0
        %512 = vmatprep.subr.mxu0 0.0
        %513 = vmatpush1.msra.mxu0 0.0
        %514 = vmatprep.subr.mxu0 0.0
        %515 = vmatpush1.msra.mxu0 0.0
        %516 = vmatprep.subr.mxu0 0.0
        %517 = vmatpush1.msra.mxu0 0.0
        %518 = vmatprep.subr.mxu0 0.0
        %519 = vmatpush1.msra.mxu0 0.0
        %520 = vmatprep.subr.mxu0 0.0
        %521 = vmatpush1.msra.mxu0 0.0
        %522 = vmatprep.subr.mxu0 0.0
        %523 = vmatpush1.msra.mxu0 0.0
        %524 = vmatprep.subr.mxu0 0.0
        %525 = vmatpush1.msra.mxu0 0.0
        %526 = vmatprep.subr.mxu0 0.0
        %527 = vmatpush1.msra.mxu0 0.0
        %528 = vmatprep.subr.mxu0 0.0
        %529 = vmatpush1.msra.mxu0 0.0
        %530 = vmatprep.subr.mxu0 0.0
        %531 = vmatpush1.msra.mxu0 0.0
        %532 = vmatprep.subr.mxu0 0.0
        %533 = vmatpush1.msra.mxu0 0.0
        %534 = vmatprep.subr.mxu0 0.0
        %535 = vmatpush1.msra.mxu0 0.0
        %536 = vmatprep.subr.mxu0 0.0
        %537 = vmatpush1.msra.mxu0 0.0
        %538 = vmatprep.subr.mxu0 0.0
        %539 = vmatpush1.msra.mxu0 0.0
        %540 = vmatprep.subr.mxu0 0.0
        %541 = vmatpush1.msra.mxu0 0.0
        %542 = vmatprep.mubr.f32.mxu0 0.0
        %543 = vmatmul.mubr.f32.gmra.mrb[0].mxu0 %v364
        %v544 = vpop.f32.mrb[0].mxu0
        %v545 = vadd.f32 0.0, %v544
        %v546 = vpop.f32.mrb[0].mxu0
        %v547 = vadd.f32 0.0, %v546
        %548 = vdwg.mxu0
        %s549 = scalar_lea.vmem [#allocation2], 16
        %550 = vst [vmem:[%s549] sm:$0xff] %v545
        %551 = vst [vmem:[%s549 + $0x8] sm:$0xff] %v547
        %v552 = vadd.f32 %v439, %v545
        %v553 = vadd.f32 %v440, %v547
        %s554 = scalar_lea.vmem %s276, 2
        %v555 = vld [vmem:[%s554] ss:$8 sm:$0x3]
        %v557 = vlaneseq
        %v558 = vshrl.u32 %v557, 7
        %v559 = vsub.s32 0, %v558
        %v560 = vrot.slane %v555, %v559
        %v561 = vlaneseq
        %v562 = vshrl.u32 %v561, 7
        %v563 = vsub.s32 1, %v562
        %v564 = vrot.slane %v555, %v563
        %v567 = vmul.f32 %v560, %v301
        %v568 = vmul.f32 %v564, %v301
        %v569 = vmul.f32 %v560, %v306
        %v570 = vmul.f32 %v564, %v306
        %v571 = vmul.f32 %v560, %v311
        %v572 = vmul.f32 %v564, %v311
        %v573 = vmul.f32 %v560, %v316
        %v574 = vmul.f32 %v564, %v316
        %v575 = vadd.f32 %v567, %v329
        %v576 = vadd.f32 %v568, %v329
        %v577 = vadd.f32 %v569, %v334
        %v578 = vadd.f32 %v570, %v334
        %v579 = vadd.f32 %v571, %v339
        %v580 = vadd.f32 %v572, %v339
        %v581 = vadd.f32 %v573, %v344
        %v582 = vadd.f32 %v574, %v344
        %v583 = vmax.f32 %v575, 0.0
        %v584 = vmax.f32 %v576, 0.0
        %v585 = vmax.f32 %v577, 0.0
        %v586 = vmax.f32 %v578, 0.0
        %v587 = vmax.f32 %v579, 0.0
        %v588 = vmax.f32 %v580, 0.0
        %v589 = vmax.f32 %v581, 0.0
        %v590 = vmax.f32 %v582, 0.0
        %591 = vmatprep.subr.mxu0 %v584
        %592 = vmatpush1.msra.mxu0 %v583
        %593 = vmatprep.subr.mxu0 %v586
        %594 = vmatpush1.msra.mxu0 %v585
        %595 = vmatprep.subr.mxu0 %v588
        %596 = vmatpush1.msra.mxu0 %v587
        %597 = vmatprep.subr.mxu0 %v590
        %598 = vmatpush1.msra.mxu0 %v589
        %599 = vmatprep.subr.mxu0 0.0
        %600 = vmatpush1.msra.mxu0 0.0
        %601 = vmatprep.subr.mxu0 0.0
        %602 = vmatpush1.msra.mxu0 0.0
        %603 = vmatprep.subr.mxu0 0.0
        %604 = vmatpush1.msra.mxu0 0.0
        %605 = vmatprep.subr.mxu0 0.0
        %606 = vmatpush1.msra.mxu0 0.0
        %607 = vmatprep.subr.mxu0 0.0
        %608 = vmatpush1.msra.mxu0 0.0
        %609 = vmatprep.subr.mxu0 0.0
        %610 = vmatpush1.msra.mxu0 0.0
        %611 = vmatprep.subr.mxu0 0.0
        %612 = vmatpush1.msra.mxu0 0.0
        %613 = vmatprep.subr.mxu0 0.0
        %614 = vmatpush1.msra.mxu0 0.0
        %615 = vmatprep.subr.mxu0 0.0
        %616 = vmatpush1.msra.mxu0 0.0
        %617 = vmatprep.subr.mxu0 0.0
        %618 = vmatpush1.msra.mxu0 0.0
        %619 = vmatprep.subr.mxu0 0.0
        %620 = vmatpush1.msra.mxu0 0.0
        %621 = vmatprep.subr.mxu0 0.0
        %622 = vmatpush1.msra.mxu0 0.0
        %623 = vmatprep.subr.mxu0 0.0
        %624 = vmatpush1.msra.mxu0 0.0
        %625 = vmatprep.subr.mxu0 0.0
        %626 = vmatpush1.msra.mxu0 0.0
        %627 = vmatprep.subr.mxu0 0.0
        %628 = vmatpush1.msra.mxu0 0.0
        %629 = vmatprep.subr.mxu0 0.0
        %630 = vmatpush1.msra.mxu0 0.0
        %631 = vmatprep.subr.mxu0 0.0
        %632 = vmatpush1.msra.mxu0 0.0
        %633 = vmatprep.subr.mxu0 0.0
        %634 = vmatpush1.msra.mxu0 0.0
        %635 = vmatprep.subr.mxu0 0.0
        %636 = vmatpush1.msra.mxu0 0.0
        %637 = vmatprep.subr.mxu0 0.0
        %638 = vmatpush1.msra.mxu0 0.0
        %639 = vmatprep.subr.mxu0 0.0
        %640 = vmatpush1.msra.mxu0 0.0
        %641 = vmatprep.subr.mxu0 0.0
        %642 = vmatpush1.msra.mxu0 0.0
        %643 = vmatprep.subr.mxu0 0.0
        %644 = vmatpush1.msra.mxu0 0.0
        %645 = vmatprep.subr.mxu0 0.0
        %646 = vmatpush1.msra.mxu0 0.0
        %647 = vmatprep.subr.mxu0 0.0
        %648 = vmatpush1.msra.mxu0 0.0
        %649 = vmatprep.subr.mxu0 0.0
        %650 = vmatpush1.msra.mxu0 0.0
        %651 = vmatprep.subr.mxu0 0.0
        %652 = vmatpush1.msra.mxu0 0.0
        %653 = vmatprep.subr.mxu0 0.0
        %654 = vmatpush1.msra.mxu0 0.0
        %655 = vmatprep.mubr.f32.mxu0 0.0
        %656 = vmatmul.mubr.f32.gmra.mrb[0].mxu0 %v364
        %v657 = vpop.f32.mrb[0].mxu0
        %v658 = vadd.f32 0.0, %v657
        %v659 = vpop.f32.mrb[0].mxu0
        %v660 = vadd.f32 0.0, %v659
        %661 = vdwg.mxu0
        %s662 = scalar_lea.vmem [#allocation2], 32
        %663 = vst [vmem:[%s662] sm:$0xff] %v658
        %664 = vst [vmem:[%s662 + $0x8] sm:$0xff] %v660
        %v665 = vadd.f32 %v552, %v658
        %v666 = vadd.f32 %v553, %v660
        %s667 = scalar_lea.vmem %s276, 3
        %v668 = vld [vmem:[%s667] ss:$8 sm:$0x3]
        %v670 = vlaneseq
        %v671 = vshrl.u32 %v670, 7
        %v672 = vsub.s32 0, %v671
        %v673 = vrot.slane %v668, %v672
        %v674 = vlaneseq
        %v675 = vshrl.u32 %v674, 7
        %v676 = vsub.s32 1, %v675
        %v677 = vrot.slane %v668, %v676
        %v680 = vmul.f32 %v673, %v301
        %v681 = vmul.f32 %v677, %v301
        %v682 = vmul.f32 %v673, %v306
        %v683 = vmul.f32 %v677, %v306
        %v684 = vmul.f32 %v673, %v311
        %v685 = vmul.f32 %v677, %v311
        %v686 = vmul.f32 %v673, %v316
        %v687 = vmul.f32 %v677, %v316
        %v688 = vadd.f32 %v680, %v329
        %v689 = vadd.f32 %v681, %v329
        %v690 = vadd.f32 %v682, %v334
        %v691 = vadd.f32 %v683, %v334
        %v692 = vadd.f32 %v684, %v339
        %v693 = vadd.f32 %v685, %v339
        %v694 = vadd.f32 %v686, %v344
        %v695 = vadd.f32 %v687, %v344
        %v696 = vmax.f32 %v688, 0.0
        %v697 = vmax.f32 %v689, 0.0
        %v698 = vmax.f32 %v690, 0.0
        %v699 = vmax.f32 %v691, 0.0
        %v700 = vmax.f32 %v692, 0.0
        %v701 = vmax.f32 %v693, 0.0
        %v702 = vmax.f32 %v694, 0.0
        %v703 = vmax.f32 %v695, 0.0
        %704 = vmatprep.subr.mxu0 %v697
        %705 = vmatpush1.msra.mxu0 %v696
        %706 = vmatprep.subr.mxu0 %v699
        %707 = vmatpush1.msra.mxu0 %v698
        %708 = vmatprep.subr.mxu0 %v701
        %709 = vmatpush1.msra.mxu0 %v700
        %710 = vmatprep.subr.mxu0 %v703
        %711 = vmatpush1.msra.mxu0 %v702
        %712 = vmatprep.subr.mxu0 0.0
        %713 = vmatpush1.msra.mxu0 0.0
        %714 = vmatprep.subr.mxu0 0.0
        %715 = vmatpush1.msra.mxu0 0.0
        %716 = vmatprep.subr.mxu0 0.0
        %717 = vmatpush1.msra.mxu0 0.0
        %718 = vmatprep.subr.mxu0 0.0
        %719 = vmatpush1.msra.mxu0 0.0
        %720 = vmatprep.subr.mxu0 0.0
        %721 = vmatpush1.msra.mxu0 0.0
        %722 = vmatprep.subr.mxu0 0.0
        %723 = vmatpush1.msra.mxu0 0.0
        %724 = vmatprep.subr.mxu0 0.0
        %725 = vmatpush1.msra.mxu0 0.0
        %726 = vmatprep.subr.mxu0 0.0
        %727 = vmatpush1.msra.mxu0 0.0
        %728 = vmatprep.subr.mxu0 0.0
        %729 = vmatpush1.msra.mxu0 0.0
        %730 = vmatprep.subr.mxu0 0.0
        %731 = vmatpush1.msra.mxu0 0.0
        %732 = vmatprep.subr.mxu0 0.0
        %733 = vmatpush1.msra.mxu0 0.0
        %734 = vmatprep.subr.mxu0 0.0
        %735 = vmatpush1.msra.mxu0 0.0
        %736 = vmatprep.subr.mxu0 0.0
        %737 = vmatpush1.msra.mxu0 0.0
        %738 = vmatprep.subr.mxu0 0.0
        %739 = vmatpush1.msra.mxu0 0.0
        %740 = vmatprep.subr.mxu0 0.0
        %741 = vmatpush1.msra.mxu0 0.0
        %742 = vmatprep.subr.mxu0 0.0
        %743 = vmatpush1.msra.mxu0 0.0
        %744 = vmatprep.subr.mxu0 0.0
        %745 = vmatpush1.msra.mxu0 0.0
        %746 = vmatprep.subr.mxu0 0.0
        %747 = vmatpush1.msra.mxu0 0.0
        %748 = vmatprep.subr.mxu0 0.0
        %749 = vmatpush1.msra.mxu0 0.0
        %750 = vmatprep.subr.mxu0 0.0
        %751 = vmatpush1.msra.mxu0 0.0
        %752 = vmatprep.subr.mxu0 0.0
        %753 = vmatpush1.msra.mxu0 0.0
        %754 = vmatprep.subr.mxu0 0.0
        %755 = vmatpush1.msra.mxu0 0.0
        %756 = vmatprep.subr.mxu0 0.0
        %757 = vmatpush1.msra.mxu0 0.0
        %758 = vmatprep.subr.mxu0 0.0
        %759 = vmatpush1.msra.mxu0 0.0
        %760 = vmatprep.subr.mxu0 0.0
        %761 = vmatpush1.msra.mxu0 0.0
        %762 = vmatprep.subr.mxu0 0.0
        %763 = vmatpush1.msra.mxu0 0.0
        %764 = vmatprep.subr.mxu0 0.0
        %765 = vmatpush1.msra.mxu0 0.0
        %766 = vmatprep.subr.mxu0 0.0
        %767 = vmatpush1.msra.mxu0 0.0
        %768 = vmatprep.mubr.f32.mxu0 0.0
        %769 = vmatmul.mubr.f32.gmra.mrb[0].mxu0 %v364
        %v770 = vpop.f32.mrb[0].mxu0
        %v771 = vadd.f32 0.0, %v770
        %v772 = vpop.f32.mrb[0].mxu0
        %v773 = vadd.f32 0.0, %v772
        %774 = vdwg.mxu0
        %s775 = scalar_lea.vmem [#allocation2], 48
        %776 = vst [vmem:[%s775] sm:$0xff] %v771
        %777 = vst [vmem:[%s775 + $0x8] sm:$0xff] %v773
        %v778 = vadd.f32 %v665, %v771
        %v779 = vadd.f32 %v666, %v773
        %s780 = scalar_lea.vmem %s276, 4
        %v781 = vld [vmem:[%s780] ss:$8 sm:$0x3]
        %v783 = vlaneseq
        %v784 = vshrl.u32 %v783, 7
        %v785 = vsub.s32 0, %v784
        %v786 = vrot.slane %v781, %v785
        %v787 = vlaneseq
        %v788 = vshrl.u32 %v787, 7
        %v789 = vsub.s32 1, %v788
        %v790 = vrot.slane %v781, %v789
        %v793 = vmul.f32 %v786, %v301
        %v794 = vmul.f32 %v790, %v301
        %v795 = vmul.f32 %v786, %v306
        %v796 = vmul.f32 %v790, %v306
        %v797 = vmul.f32 %v786, %v311
        %v798 = vmul.f32 %v790, %v311
        %v799 = vmul.f32 %v786, %v316
        %v800 = vmul.f32 %v790, %v316
        %v801 = vadd.f32 %v793, %v329
        %v802 = vadd.f32 %v794, %v329
        %v803 = vadd.f32 %v795, %v334
        %v804 = vadd.f32 %v796, %v334
        %v805 = vadd.f32 %v797, %v339
        %v806 = vadd.f32 %v798, %v339
        %v807 = vadd.f32 %v799, %v344
        %v808 = vadd.f32 %v800, %v344
        %v809 = vmax.f32 %v801, 0.0
        %v810 = vmax.f32 %v802, 0.0
        %v811 = vmax.f32 %v803, 0.0
        %v812 = vmax.f32 %v804, 0.0
        %v813 = vmax.f32 %v805, 0.0
        %v814 = vmax.f32 %v806, 0.0
        %v815 = vmax.f32 %v807, 0.0
        %v816 = vmax.f32 %v808, 0.0
        %817 = vmatprep.subr.mxu0 %v810
        %818 = vmatpush1.msra.mxu0 %v809
        %819 = vmatprep.subr.mxu0 %v812
        %820 = vmatpush1.msra.mxu0 %v811
        %821 = vmatprep.subr.mxu0 %v814
        %822 = vmatpush1.msra.mxu0 %v813
        %823 = vmatprep.subr.mxu0 %v816
        %824 = vmatpush1.msra.mxu0 %v815
        %825 = vmatprep.subr.mxu0 0.0
        %826 = vmatpush1.msra.mxu0 0.0
        %827 = vmatprep.subr.mxu0 0.0
        %828 = vmatpush1.msra.mxu0 0.0
        %829 = vmatprep.subr.mxu0 0.0
        %830 = vmatpush1.msra.mxu0 0.0
        %831 = vmatprep.subr.mxu0 0.0
        %832 = vmatpush1.msra.mxu0 0.0
        %833 = vmatprep.subr.mxu0 0.0
        %834 = vmatpush1.msra.mxu0 0.0
        %835 = vmatprep.subr.mxu0 0.0
        %836 = vmatpush1.msra.mxu0 0.0
        %837 = vmatprep.subr.mxu0 0.0
        %838 = vmatpush1.msra.mxu0 0.0
        %839 = vmatprep.subr.mxu0 0.0
        %840 = vmatpush1.msra.mxu0 0.0
        %841 = vmatprep.subr.mxu0 0.0
        %842 = vmatpush1.msra.mxu0 0.0
        %843 = vmatprep.subr.mxu0 0.0
        %844 = vmatpush1.msra.mxu0 0.0
        %845 = vmatprep.subr.mxu0 0.0
        %846 = vmatpush1.msra.mxu0 0.0
        %847 = vmatprep.subr.mxu0 0.0
        %848 = vmatpush1.msra.mxu0 0.0
        %849 = vmatprep.subr.mxu0 0.0
        %850 = vmatpush1.msra.mxu0 0.0
        %851 = vmatprep.subr.mxu0 0.0
        %852 = vmatpush1.msra.mxu0 0.0
        %853 = vmatprep.subr.mxu0 0.0
        %854 = vmatpush1.msra.mxu0 0.0
        %855 = vmatprep.subr.mxu0 0.0
        %856 = vmatpush1.msra.mxu0 0.0
        %857 = vmatprep.subr.mxu0 0.0
        %858 = vmatpush1.msra.mxu0 0.0
        %859 = vmatprep.subr.mxu0 0.0
        %860 = vmatpush1.msra.mxu0 0.0
        %861 = vmatprep.subr.mxu0 0.0
        %862 = vmatpush1.msra.mxu0 0.0
        %863 = vmatprep.subr.mxu0 0.0
        %864 = vmatpush1.msra.mxu0 0.0
        %865 = vmatprep.subr.mxu0 0.0
        %866 = vmatpush1.msra.mxu0 0.0
        %867 = vmatprep.subr.mxu0 0.0
        %868 = vmatpush1.msra.mxu0 0.0
        %869 = vmatprep.subr.mxu0 0.0
        %870 = vmatpush1.msra.mxu0 0.0
        %871 = vmatprep.subr.mxu0 0.0
        %872 = vmatpush1.msra.mxu0 0.0
        %873 = vmatprep.subr.mxu0 0.0
        %874 = vmatpush1.msra.mxu0 0.0
        %875 = vmatprep.subr.mxu0 0.0
        %876 = vmatpush1.msra.mxu0 0.0
        %877 = vmatprep.subr.mxu0 0.0
        %878 = vmatpush1.msra.mxu0 0.0
        %879 = vmatprep.subr.mxu0 0.0
        %880 = vmatpush1.msra.mxu0 0.0
        %881 = vmatprep.mubr.f32.mxu0 0.0
        %882 = vmatmul.mubr.f32.gmra.mrb[0].mxu0 %v364
        %v883 = vpop.f32.mrb[0].mxu0
        %v884 = vadd.f32 0.0, %v883
        %v885 = vpop.f32.mrb[0].mxu0
        %v886 = vadd.f32 0.0, %v885
        %887 = vdwg.mxu0
        %s888 = scalar_lea.vmem [#allocation2], 64
        %889 = vst [vmem:[%s888] sm:$0xff] %v884
        %890 = vst [vmem:[%s888 + $0x8] sm:$0xff] %v886
        %v891 = vadd.f32 %v778, %v884
        %v892 = vadd.f32 %v779, %v886
        %s893 = scalar_lea.vmem %s276, 5
        %v894 = vld [vmem:[%s893] ss:$8 sm:$0x3]
        %v896 = vlaneseq
        %v897 = vshrl.u32 %v896, 7
        %v898 = vsub.s32 0, %v897
        %v899 = vrot.slane %v894, %v898
        %v900 = vlaneseq
        %v901 = vshrl.u32 %v900, 7
        %v902 = vsub.s32 1, %v901
        %v903 = vrot.slane %v894, %v902
        %v906 = vmul.f32 %v899, %v301
        %v907 = vmul.f32 %v903, %v301
        %v908 = vmul.f32 %v899, %v306
        %v909 = vmul.f32 %v903, %v306
        %v910 = vmul.f32 %v899, %v311
        %v911 = vmul.f32 %v903, %v311
        %v912 = vmul.f32 %v899, %v316
        %v913 = vmul.f32 %v903, %v316
        %v914 = vadd.f32 %v906, %v329
        %v915 = vadd.f32 %v907, %v329
        %v916 = vadd.f32 %v908, %v334
        %v917 = vadd.f32 %v909, %v334
        %v918 = vadd.f32 %v910, %v339
        %v919 = vadd.f32 %v911, %v339
        %v920 = vadd.f32 %v912, %v344
        %v921 = vadd.f32 %v913, %v344
        %v922 = vmax.f32 %v914, 0.0
        %v923 = vmax.f32 %v915, 0.0
        %v924 = vmax.f32 %v916, 0.0
        %v925 = vmax.f32 %v917, 0.0
        %v926 = vmax.f32 %v918, 0.0
        %v927 = vmax.f32 %v919, 0.0
        %v928 = vmax.f32 %v920, 0.0
        %v929 = vmax.f32 %v921, 0.0
        %930 = vmatprep.subr.mxu0 %v923
        %931 = vmatpush1.msra.mxu0 %v922
        %932 = vmatprep.subr.mxu0 %v925
        %933 = vmatpush1.msra.mxu0 %v924
        %934 = vmatprep.subr.mxu0 %v927
        %935 = vmatpush1.msra.mxu0 %v926
        %936 = vmatprep.subr.mxu0 %v929
        %937 = vmatpush1.msra.mxu0 %v928
        %938 = vmatprep.subr.mxu0 0.0
        %939 = vmatpush1.msra.mxu0 0.0
        %940 = vmatprep.subr.mxu0 0.0
        %941 = vmatpush1.msra.mxu0 0.0
        %942 = vmatprep.subr.mxu0 0.0
        %943 = vmatpush1.msra.mxu0 0.0
        %944 = vmatprep.subr.mxu0 0.0
        %945 = vmatpush1.msra.mxu0 0.0
        %946 = vmatprep.subr.mxu0 0.0
        %947 = vmatpush1.msra.mxu0 0.0
        %948 = vmatprep.subr.mxu0 0.0
        %949 = vmatpush1.msra.mxu0 0.0
        %950 = vmatprep.subr.mxu0 0.0
        %951 = vmatpush1.msra.mxu0 0.0
        %952 = vmatprep.subr.mxu0 0.0
        %953 = vmatpush1.msra.mxu0 0.0
        %954 = vmatprep.subr.mxu0 0.0
        %955 = vmatpush1.msra.mxu0 0.0
        %956 = vmatprep.subr.mxu0 0.0
        %957 = vmatpush1.msra.mxu0 0.0
        %958 = vmatprep.subr.mxu0 0.0
        %959 = vmatpush1.msra.mxu0 0.0
        %960 = vmatprep.subr.mxu0 0.0
        %961 = vmatpush1.msra.mxu0 0.0
        %962 = vmatprep.subr.mxu0 0.0
        %963 = vmatpush1.msra.mxu0 0.0
        %964 = vmatprep.subr.mxu0 0.0
        %965 = vmatpush1.msra.mxu0 0.0
        %966 = vmatprep.subr.mxu0 0.0
        %967 = vmatpush1.msra.mxu0 0.0
        %968 = vmatprep.subr.mxu0 0.0
        %969 = vmatpush1.msra.mxu0 0.0
        %970 = vmatprep.subr.mxu0 0.0
        %971 = vmatpush1.msra.mxu0 0.0
        %972 = vmatprep.subr.mxu0 0.0
        %973 = vmatpush1.msra.mxu0 0.0
        %974 = vmatprep.subr.mxu0 0.0
        %975 = vmatpush1.msra.mxu0 0.0
        %976 = vmatprep.subr.mxu0 0.0
        %977 = vmatpush1.msra.mxu0 0.0
        %978 = vmatprep.subr.mxu0 0.0
        %979 = vmatpush1.msra.mxu0 0.0
        %980 = vmatprep.subr.mxu0 0.0
        %981 = vmatpush1.msra.mxu0 0.0
        %982 = vmatprep.subr.mxu0 0.0
        %983 = vmatpush1.msra.mxu0 0.0
        %984 = vmatprep.subr.mxu0 0.0
        %985 = vmatpush1.msra.mxu0 0.0
        %986 = vmatprep.subr.mxu0 0.0
        %987 = vmatpush1.msra.mxu0 0.0
        %988 = vmatprep.subr.mxu0 0.0
        %989 = vmatpush1.msra.mxu0 0.0
        %990 = vmatprep.subr.mxu0 0.0
        %991 = vmatpush1.msra.mxu0 0.0
        %992 = vmatprep.subr.mxu0 0.0
        %993 = vmatpush1.msra.mxu0 0.0
        %994 = vmatprep.mubr.f32.mxu0 0.0
        %995 = vmatmul.mubr.f32.gmra.mrb[0].mxu0 %v364
        %v996 = vpop.f32.mrb[0].mxu0
        %v997 = vadd.f32 0.0, %v996
        %v998 = vpop.f32.mrb[0].mxu0
        %v999 = vadd.f32 0.0, %v998
        %1000 = vdwg.mxu0
        %s1001 = scalar_lea.vmem [#allocation2], 80
        %1002 = vst [vmem:[%s1001] sm:$0xff] %v997
        %1003 = vst [vmem:[%s1001 + $0x8] sm:$0xff] %v999
        %v1004 = vadd.f32 %v891, %v997
        %v1005 = vadd.f32 %v892, %v999
        %s1006 = scalar_lea.vmem %s276, 6
        %v1007 = vld [vmem:[%s1006] ss:$8 sm:$0x3]
        %v1009 = vlaneseq
        %v1010 = vshrl.u32 %v1009, 7
        %v1011 = vsub.s32 0, %v1010
        %v1012 = vrot.slane %v1007, %v1011
        %v1013 = vlaneseq
        %v1014 = vshrl.u32 %v1013, 7
        %v1015 = vsub.s32 1, %v1014
        %v1016 = vrot.slane %v1007, %v1015
        %v1019 = vmul.f32 %v1012, %v301
        %v1020 = vmul.f32 %v1016, %v301
        %v1021 = vmul.f32 %v1012, %v306
        %v1022 = vmul.f32 %v1016, %v306
        %v1023 = vmul.f32 %v1012, %v311
        %v1024 = vmul.f32 %v1016, %v311
        %v1025 = vmul.f32 %v1012, %v316
        %v1026 = vmul.f32 %v1016, %v316
        %v1027 = vadd.f32 %v1019, %v329
        %v1028 = vadd.f32 %v1020, %v329
        %v1029 = vadd.f32 %v1021, %v334
        %v1030 = vadd.f32 %v1022, %v334
        %v1031 = vadd.f32 %v1023, %v339
        %v1032 = vadd.f32 %v1024, %v339
        %v1033 = vadd.f32 %v1025, %v344
        %v1034 = vadd.f32 %v1026, %v344
        %v1035 = vmax.f32 %v1027, 0.0
        %v1036 = vmax.f32 %v1028, 0.0
        %v1037 = vmax.f32 %v1029, 0.0
        %v1038 = vmax.f32 %v1030, 0.0
        %v1039 = vmax.f32 %v1031, 0.0
        %v1040 = vmax.f32 %v1032, 0.0
        %v1041 = vmax.f32 %v1033, 0.0
        %v1042 = vmax.f32 %v1034, 0.0
        %1043 = vmatprep.subr.mxu0 %v1036
        %1044 = vmatpush1.msra.mxu0 %v1035
        %1045 = vmatprep.subr.mxu0 %v1038
        %1046 = vmatpush1.msra.mxu0 %v1037
        %1047 = vmatprep.subr.mxu0 %v1040
        %1048 = vmatpush1.msra.mxu0 %v1039
        %1049 = vmatprep.subr.mxu0 %v1042
        %1050 = vmatpush1.msra.mxu0 %v1041
        %1051 = vmatprep.subr.mxu0 0.0
        %1052 = vmatpush1.msra.mxu0 0.0
        %1053 = vmatprep.subr.mxu0 0.0
        %1054 = vmatpush1.msra.mxu0 0.0
        %1055 = vmatprep.subr.mxu0 0.0
        %1056 = vmatpush1.msra.mxu0 0.0
        %1057 = vmatprep.subr.mxu0 0.0
        %1058 = vmatpush1.msra.mxu0 0.0
        %1059 = vmatprep.subr.mxu0 0.0
        %1060 = vmatpush1.msra.mxu0 0.0
        %1061 = vmatprep.subr.mxu0 0.0
        %1062 = vmatpush1.msra.mxu0 0.0
        %1063 = vmatprep.subr.mxu0 0.0
        %1064 = vmatpush1.msra.mxu0 0.0
        %1065 = vmatprep.subr.mxu0 0.0
        %1066 = vmatpush1.msra.mxu0 0.0
        %1067 = vmatprep.subr.mxu0 0.0
        %1068 = vmatpush1.msra.mxu0 0.0
        %1069 = vmatprep.subr.mxu0 0.0
        %1070 = vmatpush1.msra.mxu0 0.0
        %1071 = vmatprep.subr.mxu0 0.0
        %1072 = vmatpush1.msra.mxu0 0.0
        %1073 = vmatprep.subr.mxu0 0.0
        %1074 = vmatpush1.msra.mxu0 0.0
        %1075 = vmatprep.subr.mxu0 0.0
        %1076 = vmatpush1.msra.mxu0 0.0
        %1077 = vmatprep.subr.mxu0 0.0
        %1078 = vmatpush1.msra.mxu0 0.0
        %1079 = vmatprep.subr.mxu0 0.0
        %1080 = vmatpush1.msra.mxu0 0.0
        %1081 = vmatprep.subr.mxu0 0.0
        %1082 = vmatpush1.msra.mxu0 0.0
        %1083 = vmatprep.subr.mxu0 0.0
        %1084 = vmatpush1.msra.mxu0 0.0
        %1085 = vmatprep.subr.mxu0 0.0
        %1086 = vmatpush1.msra.mxu0 0.0
        %1087 = vmatprep.subr.mxu0 0.0
        %1088 = vmatpush1.msra.mxu0 0.0
        %1089 = vmatprep.subr.mxu0 0.0
        %1090 = vmatpush1.msra.mxu0 0.0
        %1091 = vmatprep.subr.mxu0 0.0
        %1092 = vmatpush1.msra.mxu0 0.0
        %1093 = vmatprep.subr.mxu0 0.0
        %1094 = vmatpush1.msra.mxu0 0.0
        %1095 = vmatprep.subr.mxu0 0.0
        %1096 = vmatpush1.msra.mxu0 0.0
        %1097 = vmatprep.subr.mxu0 0.0
        %1098 = vmatpush1.msra.mxu0 0.0
        %1099 = vmatprep.subr.mxu0 0.0
        %1100 = vmatpush1.msra.mxu0 0.0
        %1101 = vmatprep.subr.mxu0 0.0
        %1102 = vmatpush1.msra.mxu0 0.0
        %1103 = vmatprep.subr.mxu0 0.0
        %1104 = vmatpush1.msra.mxu0 0.0
        %1105 = vmatprep.subr.mxu0 0.0
        %1106 = vmatpush1.msra.mxu0 0.0
        %1107 = vmatprep.mubr.f32.mxu0 0.0
        %1108 = vmatmul.mubr.f32.gmra.mrb[0].mxu0 %v364
        %v1109 = vpop.f32.mrb[0].mxu0
        %v1110 = vadd.f32 0.0, %v1109
        %v1111 = vpop.f32.mrb[0].mxu0
        %v1112 = vadd.f32 0.0, %v1111
        %1113 = vdwg.mxu0
        %s1114 = scalar_lea.vmem [#allocation2], 96
        %1115 = vst [vmem:[%s1114] sm:$0xff] %v1110
        %1116 = vst [vmem:[%s1114 + $0x8] sm:$0xff] %v1112
        %v1117 = vadd.f32 %v1004, %v1110
        %v1118 = vadd.f32 %v1005, %v1112
        %s1119 = scalar_lea.vmem %s276, 7
        %v1120 = vld [vmem:[%s1119] ss:$8 sm:$0x3]
        %v1122 = vlaneseq
        %v1123 = vshrl.u32 %v1122, 7
        %v1124 = vsub.s32 0, %v1123
        %v1125 = vrot.slane %v1120, %v1124
        %v1126 = vlaneseq
        %v1127 = vshrl.u32 %v1126, 7
        %v1128 = vsub.s32 1, %v1127
        %v1129 = vrot.slane %v1120, %v1128
        %v1132 = vmul.f32 %v1125, %v301
        %v1133 = vmul.f32 %v1129, %v301
        %v1134 = vmul.f32 %v1125, %v306
        %v1135 = vmul.f32 %v1129, %v306
        %v1136 = vmul.f32 %v1125, %v311
        %v1137 = vmul.f32 %v1129, %v311
        %v1138 = vmul.f32 %v1125, %v316
        %v1139 = vmul.f32 %v1129, %v316
        %v1140 = vadd.f32 %v1132, %v329
        %v1141 = vadd.f32 %v1133, %v329
        %v1142 = vadd.f32 %v1134, %v334
        %v1143 = vadd.f32 %v1135, %v334
        %v1144 = vadd.f32 %v1136, %v339
        %v1145 = vadd.f32 %v1137, %v339
        %v1146 = vadd.f32 %v1138, %v344
        %v1147 = vadd.f32 %v1139, %v344
        %v1148 = vmax.f32 %v1140, 0.0
        %v1149 = vmax.f32 %v1141, 0.0
        %v1150 = vmax.f32 %v1142, 0.0
        %v1151 = vmax.f32 %v1143, 0.0
        %v1152 = vmax.f32 %v1144, 0.0
        %v1153 = vmax.f32 %v1145, 0.0
        %v1154 = vmax.f32 %v1146, 0.0
        %v1155 = vmax.f32 %v1147, 0.0
        %1156 = vmatprep.subr.mxu0 %v1149
        %1157 = vmatpush1.msra.mxu0 %v1148
        %1158 = vmatprep.subr.mxu0 %v1151
        %1159 = vmatpush1.msra.mxu0 %v1150
        %1160 = vmatprep.subr.mxu0 %v1153
        %1161 = vmatpush1.msra.mxu0 %v1152
        %1162 = vmatprep.subr.mxu0 %v1155
        %1163 = vmatpush1.msra.mxu0 %v1154
        %1164 = vmatprep.subr.mxu0 0.0
        %1165 = vmatpush1.msra.mxu0 0.0
        %1166 = vmatprep.subr.mxu0 0.0
        %1167 = vmatpush1.msra.mxu0 0.0
        %1168 = vmatprep.subr.mxu0 0.0
        %1169 = vmatpush1.msra.mxu0 0.0
        %1170 = vmatprep.subr.mxu0 0.0
        %1171 = vmatpush1.msra.mxu0 0.0
        %1172 = vmatprep.subr.mxu0 0.0
        %1173 = vmatpush1.msra.mxu0 0.0
        %1174 = vmatprep.subr.mxu0 0.0
        %1175 = vmatpush1.msra.mxu0 0.0
        %1176 = vmatprep.subr.mxu0 0.0
        %1177 = vmatpush1.msra.mxu0 0.0
        %1178 = vmatprep.subr.mxu0 0.0
        %1179 = vmatpush1.msra.mxu0 0.0
        %1180 = vmatprep.subr.mxu0 0.0
        %1181 = vmatpush1.msra.mxu0 0.0
        %1182 = vmatprep.subr.mxu0 0.0
        %1183 = vmatpush1.msra.mxu0 0.0
        %1184 = vmatprep.subr.mxu0 0.0
        %1185 = vmatpush1.msra.mxu0 0.0
        %1186 = vmatprep.subr.mxu0 0.0
        %1187 = vmatpush1.msra.mxu0 0.0
        %1188 = vmatprep.subr.mxu0 0.0
        %1189 = vmatpush1.msra.mxu0 0.0
        %1190 = vmatprep.subr.mxu0 0.0
        %1191 = vmatpush1.msra.mxu0 0.0
        %1192 = vmatprep.subr.mxu0 0.0
        %1193 = vmatpush1.msra.mxu0 0.0
        %1194 = vmatprep.subr.mxu0 0.0
        %1195 = vmatpush1.msra.mxu0 0.0
        %1196 = vmatprep.subr.mxu0 0.0
        %1197 = vmatpush1.msra.mxu0 0.0
        %1198 = vmatprep.subr.mxu0 0.0
        %1199 = vmatpush1.msra.mxu0 0.0
        %1200 = vmatprep.subr.mxu0 0.0
        %1201 = vmatpush1.msra.mxu0 0.0
        %1202 = vmatprep.subr.mxu0 0.0
        %1203 = vmatpush1.msra.mxu0 0.0
        %1204 = vmatprep.subr.mxu0 0.0
        %1205 = vmatpush1.msra.mxu0 0.0
        %1206 = vmatprep.subr.mxu0 0.0
        %1207 = vmatpush1.msra.mxu0 0.0
        %1208 = vmatprep.subr.mxu0 0.0
        %1209 = vmatpush1.msra.mxu0 0.0
        %1210 = vmatprep.subr.mxu0 0.0
        %1211 = vmatpush1.msra.mxu0 0.0
        %1212 = vmatprep.subr.mxu0 0.0
        %1213 = vmatpush1.msra.mxu0 0.0
        %1214 = vmatprep.subr.mxu0 0.0
        %1215 = vmatpush1.msra.mxu0 0.0
        %1216 = vmatprep.subr.mxu0 0.0
        %1217 = vmatpush1.msra.mxu0 0.0
        %1218 = vmatprep.subr.mxu0 0.0
        %1219 = vmatpush1.msra.mxu0 0.0
        %1220 = vmatprep.mubr.f32.mxu0 0.0
        %1221 = vmatmul.mubr.f32.gmra.mrb[0].mxu0 %v364
        %v1222 = vpop.f32.mrb[0].mxu0
        %v1223 = vadd.f32 0.0, %v1222
        %v1224 = vpop.f32.mrb[0].mxu0
        %v1225 = vadd.f32 0.0, %v1224
        %1226 = vdwg.mxu0
        %s1227 = scalar_lea.vmem [#allocation2], 112
        %1228 = vst [vmem:[%s1227] sm:$0xff] %v1223
        %1229 = vst [vmem:[%s1227 + $0x8] sm:$0xff] %v1225
        %v1230 = vadd.f32 %v1117, %v1223
        %v1231 = vadd.f32 %v1118, %v1225
        %v1232 = vmul.f32 %v1230, 0.125
        %v1233 = vmul.f32 %v1231, 0.125
        %v1234 = vld [vmem:[#allocation2] sm:$0xff]
        %v1235 = vld [vmem:[#allocation2 + $0x8] sm:$0xff]
        %v1236 = vsub.f32 %v1234, %v1232
        %v1237 = vsub.f32 %v1235, %v1233
        %v1238 = vmul.f32 %v1236, %v1236
        %v1239 = vmul.f32 %v1237, %v1237
        %v1240 = vadd.f32 %v1238, 0.0
        %v1241 = vadd.f32 %v1239, 0.0
        %v1242 = vld [vmem:[%s549] sm:$0xff]
        %v1243 = vld [vmem:[%s549 + $0x8] sm:$0xff]
        %v1244 = vsub.f32 %v1242, %v1232
        %v1245 = vsub.f32 %v1243, %v1233
        %v1246 = vmul.f32 %v1244, %v1244
        %v1247 = vmul.f32 %v1245, %v1245
        %v1248 = vadd.f32 %v1240, %v1246
        %v1249 = vadd.f32 %v1241, %v1247
        %v1250 = vld [vmem:[%s662] sm:$0xff]
        %v1251 = vld [vmem:[%s662 + $0x8] sm:$0xff]
        %v1252 = vsub.f32 %v1250, %v1232
        %v1253 = vsub.f32 %v1251, %v1233
        %v1254 = vmul.f32 %v1252, %v1252
        %v1255 = vmul.f32 %v1253, %v1253
        %v1256 = vadd.f32 %v1248, %v1254
        %v1257 = vadd.f32 %v1249, %v1255
        %v1258 = vld [vmem:[%s775] sm:$0xff]
        %v1259 = vld [vmem:[%s775 + $0x8] sm:$0xff]
        %v1260 = vsub.f32 %v1258, %v1232
        %v1261 = vsub.f32 %v1259, %v1233
        %v1262 = vmul.f32 %v1260, %v1260
        %v1263 = vmul.f32 %v1261, %v1261
        %v1264 = vadd.f32 %v1256, %v1262
        %v1265 = vadd.f32 %v1257, %v1263
        %v1266 = vld [vmem:[%s888] sm:$0xff]
        %v1267 = vld [vmem:[%s888 + $0x8] sm:$0xff]
        %v1268 = vsub.f32 %v1266, %v1232
        %v1269 = vsub.f32 %v1267, %v1233
        %v1270 = vmul.f32 %v1268, %v1268
        %v1271 = vmul.f32 %v1269, %v1269
        %v1272 = vadd.f32 %v1264, %v1270
        %v1273 = vadd.f32 %v1265, %v1271
        %v1274 = vld [vmem:[%s1001] sm:$0xff]
        %v1275 = vld [vmem:[%s1001 + $0x8] sm:$0xff]
        %v1276 = vsub.f32 %v1274, %v1232
        %v1277 = vsub.f32 %v1275, %v1233
        %v1278 = vmul.f32 %v1276, %v1276
        %v1279 = vmul.f32 %v1277, %v1277
        %v1280 = vadd.f32 %v1272, %v1278
        %v1281 = vadd.f32 %v1273, %v1279
        %v1282 = vld [vmem:[%s1114] sm:$0xff]
        %v1283 = vld [vmem:[%s1114 + $0x8] sm:$0xff]
        %v1284 = vsub.f32 %v1282, %v1232
        %v1285 = vsub.f32 %v1283, %v1233
        %v1286 = vmul.f32 %v1284, %v1284
        %v1287 = vmul.f32 %v1285, %v1285
        %v1288 = vadd.f32 %v1280, %v1286
        %v1289 = vadd.f32 %v1281, %v1287
        %v1290 = vld [vmem:[%s1227] sm:$0xff]
        %v1291 = vld [vmem:[%s1227 + $0x8] sm:$0xff]
        %v1292 = vsub.f32 %v1290, %v1232
        %v1293 = vsub.f32 %v1291, %v1233
        %v1294 = vmul.f32 %v1292, %v1292
        %v1295 = vmul.f32 %v1293, %v1293
        %v1296 = vadd.f32 %v1288, %v1294
        %v1297 = vadd.f32 %v1289, %v1295
        %v1298 = vmul.f32 %v1296, 0.125
        %v1299 = vmul.f32 %v1297, 0.125
        %v1300 = vadd.f32 %v1298, 1e-05
        %v1301 = vadd.f32 %v1299, 1e-05
        %v1302 = vrsqrt.pop %v1300
        %v1303 = vrsqrt.pop %v1301
        %v1304 = vmul.f32 %v1236, %v1302
        %v1305 = vmul.f32 %v1237, %v1303
        %s1306 = sld [smem:[#allocation3]]
        %v1307 = vstv %s1306
        %v1308 = vmul.f32 %v1304, %v1307
        %v1309 = vmul.f32 %v1305, %v1307
        %s1310 = sld [smem:[#allocation6]]
        %v1311 = vstv %s1310
        %v1312 = vadd.f32 %v1308, %v1311
        %v1313 = vadd.f32 %v1309, %v1311
        %1314 = vst [vmem:[%s271] sm:$0xff] %v1312
        %1315 = vst [vmem:[%s271 + $0x8] sm:$0xff] %v1313
        %v1316 = vld [vmem:[%s549] sm:$0xff]
        %v1317 = vld [vmem:[%s549 + $0x8] sm:$0xff]
        %v1318 = vsub.f32 %v1316, %v1232
        %v1319 = vsub.f32 %v1317, %v1233
        %v1320 = vmul.f32 %v1318, %v1302
        %v1321 = vmul.f32 %v1319, %v1303
        %s1322 = sld [smem:[#allocation3 + $0x1]]
        %v1323 = vstv %s1322
        %v1324 = vmul.f32 %v1320, %v1323
        %v1325 = vmul.f32 %v1321, %v1323
        %s1326 = sld [smem:[#allocation6 + $0x1]]
        %v1327 = vstv %s1326
        %v1328 = vadd.f32 %v1324, %v1327
        %v1329 = vadd.f32 %v1325, %v1327
        %s1330 = scalar_lea.vmem %s271, 16 [#allocation8]
        %1331 = vst [vmem:[%s1330] sm:$0xff] %v1328
        %1332 = vst [vmem:[%s1330 + $0x8] sm:$0xff] %v1329
        %v1333 = vld [vmem:[%s662] sm:$0xff]
        %v1334 = vld [vmem:[%s662 + $0x8] sm:$0xff]
        %v1335 = vsub.f32 %v1333, %v1232
        %v1336 = vsub.f32 %v1334, %v1233
        %v1337 = vmul.f32 %v1335, %v1302
        %v1338 = vmul.f32 %v1336, %v1303
        %s1339 = sld [smem:[#allocation3 + $0x2]]
        %v1340 = vstv %s1339
        %v1341 = vmul.f32 %v1337, %v1340
        %v1342 = vmul.f32 %v1338, %v1340
        %s1343 = sld [smem:[#allocation6 + $0x2]]
        %v1344 = vstv %s1343
        %v1345 = vadd.f32 %v1341, %v1344
        %v1346 = vadd.f32 %v1342, %v1344
        %s1347 = scalar_lea.vmem %s271, 32 [#allocation8]
        %1348 = vst [vmem:[%s1347] sm:$0xff] %v1345
        %1349 = vst [vmem:[%s1347 + $0x8] sm:$0xff] %v1346
        %v1350 = vld [vmem:[%s775] sm:$0xff]
        %v1351 = vld [vmem:[%s775 + $0x8] sm:$0xff]
        %v1352 = vsub.f32 %v1350, %v1232
        %v1353 = vsub.f32 %v1351, %v1233
        %v1354 = vmul.f32 %v1352, %v1302
        %v1355 = vmul.f32 %v1353, %v1303
        %s1356 = sld [smem:[#allocation3 + $0x3]]
        %v1357 = vstv %s1356
        %v1358 = vmul.f32 %v1354, %v1357
        %v1359 = vmul.f32 %v1355, %v1357
        %s1360 = sld [smem:[#allocation6 + $0x3]]
        %v1361 = vstv %s1360
        %v1362 = vadd.f32 %v1358, %v1361
        %v1363 = vadd.f32 %v1359, %v1361
        %s1364 = scalar_lea.vmem %s271, 48 [#allocation8]
        %1365 = vst [vmem:[%s1364] sm:$0xff] %v1362
        %1366 = vst [vmem:[%s1364 + $0x8] sm:$0xff] %v1363
        %v1367 = vld [vmem:[%s888] sm:$0xff]
        %v1368 = vld [vmem:[%s888 + $0x8] sm:$0xff]
        %v1369 = vsub.f32 %v1367, %v1232
        %v1370 = vsub.f32 %v1368, %v1233
        %v1371 = vmul.f32 %v1369, %v1302
        %v1372 = vmul.f32 %v1370, %v1303
        %s1373 = sld [smem:[#allocation3 + $0x4]]
        %v1374 = vstv %s1373
        %v1375 = vmul.f32 %v1371, %v1374
        %v1376 = vmul.f32 %v1372, %v1374
        %s1377 = sld [smem:[#allocation6 + $0x4]]
        %v1378 = vstv %s1377
        %v1379 = vadd.f32 %v1375, %v1378
        %v1380 = vadd.f32 %v1376, %v1378
        %s1381 = scalar_lea.vmem %s271, 64 [#allocation8]
        %1382 = vst [vmem:[%s1381] sm:$0xff] %v1379
        %1383 = vst [vmem:[%s1381 + $0x8] sm:$0xff] %v1380
        %v1384 = vld [vmem:[%s1001] sm:$0xff]
        %v1385 = vld [vmem:[%s1001 + $0x8] sm:$0xff]
        %v1386 = vsub.f32 %v1384, %v1232
        %v1387 = vsub.f32 %v1385, %v1233
        %v1388 = vmul.f32 %v1386, %v1302
        %v1389 = vmul.f32 %v1387, %v1303
        %s1390 = sld [smem:[#allocation3 + $0x5]]
        %v1391 = vstv %s1390
        %v1392 = vmul.f32 %v1388, %v1391
        %v1393 = vmul.f32 %v1389, %v1391
        %s1394 = sld [smem:[#allocation6 + $0x5]]
        %v1395 = vstv %s1394
        %v1396 = vadd.f32 %v1392, %v1395
        %v1397 = vadd.f32 %v1393, %v1395
        %s1398 = scalar_lea.vmem %s271, 80 [#allocation8]
        %1399 = vst [vmem:[%s1398] sm:$0xff] %v1396
        %1400 = vst [vmem:[%s1398 + $0x8] sm:$0xff] %v1397
        %v1401 = vld [vmem:[%s1114] sm:$0xff]
        %v1402 = vld [vmem:[%s1114 + $0x8] sm:$0xff]
        %v1403 = vsub.f32 %v1401, %v1232
        %v1404 = vsub.f32 %v1402, %v1233
        %v1405 = vmul.f32 %v1403, %v1302
        %v1406 = vmul.f32 %v1404, %v1303
        %s1407 = sld [smem:[#allocation3 + $0x6]]
        %v1408 = vstv %s1407
        %v1409 = vmul.f32 %v1405, %v1408
        %v1410 = vmul.f32 %v1406, %v1408
        %s1411 = sld [smem:[#allocation6 + $0x6]]
        %v1412 = vstv %s1411
        %v1413 = vadd.f32 %v1409, %v1412
        %v1414 = vadd.f32 %v1410, %v1412
        %s1415 = scalar_lea.vmem %s271, 96 [#allocation8]
        %1416 = vst [vmem:[%s1415] sm:$0xff] %v1413
        %1417 = vst [vmem:[%s1415 + $0x8] sm:$0xff] %v1414
        %v1418 = vld [vmem:[%s1227] sm:$0xff]
        %v1419 = vld [vmem:[%s1227 + $0x8] sm:$0xff]
        %v1420 = vsub.f32 %v1418, %v1232
        %v1421 = vsub.f32 %v1419, %v1233
        %v1422 = vmul.f32 %v1420, %v1302
        %v1423 = vmul.f32 %v1421, %v1303
        %s1424 = sld [smem:[#allocation3 + $0x7]]
        %v1425 = vstv %s1424
        %v1426 = vmul.f32 %v1422, %v1425
        %v1427 = vmul.f32 %v1423, %v1425
        %s1428 = sld [smem:[#allocation6 + $0x7]]
        %v1429 = vstv %s1428
        %v1430 = vadd.f32 %v1426, %v1429
        %v1431 = vadd.f32 %v1427, %v1429
        %s1432 = scalar_lea.vmem %s271, 112 [#allocation8]
        %1433 = vst [vmem:[%s1432] sm:$0xff] %v1430
        %1434 = vst [vmem:[%s1432 + $0x8] sm:$0xff] %v1431
        %s1435 = sand.u32 %s161, 1
        %s1436 = scalar_lea.sflag [#allocation4], %s1435
        %s1437 = sand.u32 %s161, 1
        %s1438 = smul.addr %s1437, 128
        %s1439 = scalar_lea.vmem [#allocation8], %s1438
        // Predicated region
        $region53: #{tpu_custom_call.1} parent=43 // pred_check
          %p1440 = pneg %p171
        $region54: #{tpu_custom_call.1} parent=43 // pred_check_branch
          %1442 = sbr.rel (%p1440) target = $region56
        $region55: #{tpu_custom_call.1} parent=43 // pred_region
          %s1444 = ssub.s32 2048, 2048
          %1445 = vsyncadd %s1436, %s1444
          %s1446 = smul.addr %s22, 16
          %s1447 = smul.addr %s1446, 128
          %s1448 = scalar_lea.hbm %s6, %s1447
          %s1449 = sshll.u32 %s1439, 4
          %s1450 = int_to_ptr.vmem [resolvable:$true] %s1449
          %1455 = dma.vmem_to_hbm [thread:$0]  %s1450, 2048, %s1448, %s1436, 256, 256, 16
        $region56: #{tpu_custom_call.1} parent=43 // pred_fallthru
          _
      $region44: #{tpu_custom_call.1} parent=5 // pred_fallthru
        _
      %p1456 = scmp.le.s32.totalorder 2, %s17
      // Predicated region
      $region57: #{tpu_custom_call.1} parent=5 // pred_check
        %p1457 = pneg %p1456
      $region58: #{tpu_custom_call.1} parent=5 // pred_check_branch
        %1459 = sbr.rel (%p1457) target = $region60
      $region59: #{tpu_custom_call.1} parent=5 // pred_region
        %s1460 = ssub.s32 %s17, 2
        // Predicated region
        $region61: #{tpu_custom_call.1} parent=59 // pred_check
          %p1461 = pneg %p177
        $region62: #{tpu_custom_call.1} parent=59 // pred_check_branch
          %1463 = sbr.rel (%p1461) target = $region64
        $region63: #{tpu_custom_call.1} parent=59 // pred_region
          %s1464 = sand.u32 %s162, 1
          %s1465 = scalar_lea.sflag [#allocation4], %s1464
          %s1466 = sand.u32 %s162, 1
          %s1467 = smul.addr %s1466, 128
          %s1468 = scalar_lea.vmem [#allocation8], %s1467
          %1469 = dma.done %s1465, 2048
        $region64: #{tpu_custom_call.1} parent=59 // pred_fallthru
          _
      $region60: #{tpu_custom_call.1} parent=5 // pred_fallthru
        _
    $region6: #{tpu_custom_call.1} parent=1 // loop_footer
      %s21 = sadd.s32 1, %s17
    $region7: #{tpu_custom_call.1} parent=1 // loop_footer_branch
      %16 = sbr.rel target = $region3
    $region8: #{tpu_custom_call.1} parent=1 // loop_exit
      _
    %1470 = vsyncpa [#allocation4], 1
    %s1471 = scalar_lea.sflag [#allocation4], 1
    %1472 = vsyncpa %s1471, 1
    %1473 = vsyncpa [#allocation5], 1
    %s1474 = scalar_lea.sflag [#allocation5], 1
    %1475 = vsyncpa %s1474, 1
    %1476 = vsyncpa [#allocation7], 1

</llo_original>
